<compile_context>
chip_gen: v5e
topology: v5e:2x2
jax: 0.10.0
libtpu: 0.0.40
codegen_flags: <defaults>
</compile_context>

<pallas_src>
import math

import jax
import jax.numpy as jnp
from jax import lax
from jax.experimental import pallas as pl
from jax.experimental.pallas import tpu as pltpu

_CONTRACT_LAST = (((1,), (1,)), ((), ()))  # contract dim-1 of both operands


# ------------------------------- kernel -------------------------------------

def _make_fused_kernel(heads_per_group, head_dim, compute_dtype,
                       output_attentions):
    inv_scale = 1.0 / math.sqrt(head_dim)

    def kernel(hs_ref, ctx_ref, mask_ref,
               wq_ref, bq_ref, wk_ref, bk_ref, wv_ref, bv_ref, *out_refs):
        # hs_ref : (Bt, Lq, Din_q)   ctx_ref : (Bt, Lk, Din_c)
        # mask_ref: (Bt, 1, Lk) additive f32 bias (0 or -1e30)
        # wq_ref : (1, gd, Din_q)    bq_ref : (1, 1, gd)   (gd = hpg*dh)
        # o_ref  : (Bt, Lq, gd)      p_ref (optional): (Bt, hpg, Lq, Lk)
        if output_attentions:
            o_ref, p_ref = out_refs
        else:
            (o_ref,) = out_refs
            p_ref = None

        Bt, Lq, din_q = hs_ref.shape
        _, Lk, din_c = ctx_ref.shape

        # ---- fused Q/K/V projections for this (head-group, batch-tile) ----
        # Merge (Bt, L) -> one tall M so the MXU amortizes the weight push.
        hs = hs_ref[...].reshape(Bt * Lq, din_q)
        ctx = ctx_ref[...].reshape(Bt * Lk, din_c)
        q = lax.dot_general(hs, wq_ref[0], _CONTRACT_LAST,
                            preferred_element_type=jnp.float32) + bq_ref[0]
        k = lax.dot_general(ctx, wk_ref[0], _CONTRACT_LAST,
                            preferred_element_type=jnp.float32) + bk_ref[0]
        v = lax.dot_general(ctx, wv_ref[0], _CONTRACT_LAST,
                            preferred_element_type=jnp.float32) + bv_ref[0]
        q = q * inv_scale                      # fold 1/sqrt(dh) into Q once
        if compute_dtype != jnp.float32:
            q = q.astype(compute_dtype)
            k = k.astype(compute_dtype)
            v = v.astype(compute_dtype)

        # ---- attention: per batch item, heads processed in pairs ----------
        for b in range(Bt):                    # static unrolled loops
            qb = q[b * Lq:(b + 1) * Lq]        # (Lq, gd)
            kb = k[b * Lk:(b + 1) * Lk]        # (Lk, gd)
            vb = v[b * Lk:(b + 1) * Lk]
            bias = mask_ref[b]                 # (1, Lk), broadcast over Lq
            h = 0
            while h < heads_per_group:
                pair = 2 if (h + 1) < heads_per_group else 1
                outs = []
                for hh in range(h, h + pair):
                    lo, hi = hh * head_dim, (hh + 1) * head_dim
                    # QK^T contracting last dims (no K transpose needed).
                    s = lax.dot_general(qb[:, lo:hi], kb[:, lo:hi],
                                        _CONTRACT_LAST,
                                        preferred_element_type=jnp.float32)
                    s = s + bias
                    # numerically stable softmax, always f32
                    mx = jnp.max(s, axis=-1, keepdims=True)
                    e = jnp.exp(s - mx)
                    den = jnp.sum(e, axis=-1, keepdims=True)
                    if output_attentions:
                        p = e / den            # exact: probs are user-visible
                        p_ref[b, hh] = p
                    else:
                        p = e * pl.reciprocal(den, approx=True)  # EUP slot
                    if compute_dtype != jnp.float32:
                        p = p.astype(compute_dtype)
                    outs.append(jnp.dot(p, vb[:, lo:hi],
                                        preferred_element_type=jnp.float32))
                pv = outs[0] if pair == 1 else jnp.concatenate(outs, axis=-1)
                # direct lane-dense store (128 lanes per pair when dh=64);
                # only <=2 accumulators live at any time (no H-way concat).
                o_ref[b, :, h * head_dim:(h + pair) * head_dim] = \
                    pv.astype(o_ref.dtype)
                h += pair

    return kernel


# ----------------------------- heuristics ------------------------------------

def _pick_batch_tile(B, max_tile=4):
    """Largest divisor of B that is <= max_tile (amortizes per-step cost)."""
    for bt in range(min(B, max_tile), 0, -1):
        if B % bt == 0:
            return bt
    return 1


def _pick_head_groups(num_heads, head_dim, num_batch_tiles, batch_tile,
                      Lq, Lk, output_attentions, requested=None):
    """Head-group count for the outer grid axis.

    Only group counts whose per-group output width is a multiple of 128
    lanes are eligible (keeps the output store lane-dense and the BlockSpec
    legal). >1 group is used to (a) feed both v7x TensorCores when the batch
    axis alone cannot and (b) bound the per-step f32 probs block.
    """
    def eligible(g):
        if num_heads % g:
            return False
        gd = (num_heads // g) * head_dim
        return g == 1 or gd % 128 == 0

    if requested is not None:
        if not eligible(requested):
            raise ValueError(f"num_head_groups={requested} is not eligible")
        return requested

    cands = [g for g in range(1, num_heads + 1) if eligible(g)]
    pick = 1
    if num_batch_tiles < 2:
        for g in cands:
            if g >= 2:
                pick = g           # smallest eligible >= 2: keep 2nd TC busy
                break
    if output_attentions:
        budget = 8 << 20           # double-buffered f32 probs block budget
        for g in cands:
            if g < pick:
                continue
            if 2 * batch_tile * (num_heads // g) * Lq * Lk * 4 <= budget:
                pick = g
                break
    return pick


# ------------------------------- wrapper -------------------------------------

def lxmert_attention(hidden_states, context, params, num_heads,
                     attention_mask=None, output_attentions=False,
                     compute_dtype=jnp.float32, out_dtype=None,
                     num_head_groups=None, max_batch_tile=4,
                     vmem_limit_bytes=32 * 1024 * 1024):
    """Fused Pallas implementation of LxmertAttention.forward (inference)."""
    B, Lq, hidden = hidden_states.shape
    Bc, Lk, ctx_dim = context.shape
    assert Bc == B
    head_dim = hidden // num_heads
    assert head_dim * num_heads == hidden
    out_dtype = hidden_states.dtype if out_dtype is None else out_dtype

    bt = _pick_batch_tile(B, max_batch_tile)
    nb = B // bt
    G = _pick_head_groups(num_heads, head_dim, nb, bt, Lq, Lk,
                          output_attentions, num_head_groups)
    hpg = num_heads // G
    gd = hpg * head_dim

    # Pre-cast in the wrapper: with bf16 compute only bf16 weight/activation
    # bytes cross HBM and occupy VMEM; f32 biases are added post-accumulation.
    hs = hidden_states.astype(compute_dtype)
    ctx = context.astype(compute_dtype)
    wq = params["wq"].astype(compute_dtype).reshape(G, gd, hidden)
    wk = params["wk"].astype(compute_dtype).reshape(G, gd, ctx_dim)
    wv = params["wv"].astype(compute_dtype).reshape(G, gd, ctx_dim)
    bq = params["bq"].astype(jnp.float32).reshape(G, 1, gd)
    bk = params["bk"].astype(jnp.float32).reshape(G, 1, gd)
    bv = params["bv"].astype(jnp.float32).reshape(G, 1, gd)

    # additive mask, built once (module semantics: mask > 0 -> -inf; we use
    # -1e30 so fully-masked rows give uniform probs instead of NaN).
    if attention_mask is None:
        add_mask = jnp.zeros((B, 1, Lk), jnp.float32)
    else:
        add_mask = jnp.where(attention_mask.reshape(B, 1, Lk) > 0,
                             jnp.float32(-1e30), jnp.float32(0.0))

    kernel = _make_fused_kernel(hpg, head_dim, compute_dtype,
                                output_attentions)

    out_shape = [jax.ShapeDtypeStruct((B, Lq, hidden), out_dtype)]
    out_specs = [pl.BlockSpec((bt, Lq, gd), lambda g, b: (b, 0, g))]
    if output_attentions:
        out_shape.append(
            jax.ShapeDtypeStruct((B, num_heads, Lq, Lk), jnp.float32))
        out_specs.append(
            pl.BlockSpec((bt, hpg, Lq, Lk), lambda g, b: (b, g, 0, 0)))

    results = pl.pallas_call(
        kernel,
        out_shape=tuple(out_shape),
        grid_spec=pltpu.PrefetchScalarGridSpec(
            num_scalar_prefetch=0,
            # head-group axis OUTER, batch axis INNER: the (bigger) weight
            # blocks stay resident across the inner axis -> fetched once.
            grid=(G, nb),
            in_specs=[
                pl.BlockSpec((bt, Lq, hidden), lambda g, b: (b, 0, 0)),
                pl.BlockSpec((bt, Lk, ctx_dim), lambda g, b: (b, 0, 0)),
                pl.BlockSpec((bt, 1, Lk), lambda g, b: (b, 0, 0)),
                pl.BlockSpec((1, gd, hidden), lambda g, b: (g, 0, 0)),
                pl.BlockSpec((1, 1, gd), lambda g, b: (g, 0, 0)),
                pl.BlockSpec((1, gd, ctx_dim), lambda g, b: (g, 0, 0)),
                pl.BlockSpec((1, 1, gd), lambda g, b: (g, 0, 0)),
                pl.BlockSpec((1, gd, ctx_dim), lambda g, b: (g, 0, 0)),
                pl.BlockSpec((1, 1, gd), lambda g, b: (g, 0, 0)),
            ],
            out_specs=tuple(out_specs),
        ),
        compiler_params=pltpu.CompilerParams(
            dimension_semantics=("parallel", "parallel"),
            vmem_limit_bytes=vmem_limit_bytes,
        ),
    )(hs, ctx, add_mask, wq, bq, wk, bk, wv, bv)

    context_layer = results[0]               # already (B, Lq, hidden)
    if output_attentions:
        return (context_layer, results[1])
    return (context_layer,)


# --------------------------- pure-JAX reference ------------------------------

def _reference(hidden_states, context, params, num_heads, attention_mask=None):
    B, Lq, hidden = hidden_states.shape
    _, Lk, _ = context.shape
    dh = hidden // num_heads
    q = hidden_states @ params["wq"].T + params["bq"]
    k = context @ params["wk"].T + params["bk"]
    v = context @ params["wv"].T + params["bv"]
    q = q.reshape(B, Lq, num_heads, dh).transpose(0, 2, 1, 3)
    k = k.reshape(B, Lk, num_heads, dh).transpose(0, 2, 1, 3)
    v = v.reshape(B, Lk, num_heads, dh).transpose(0, 2, 1, 3)
    scores = jnp.einsum("bhqd,bhkd->bhqk", q, k) / math.sqrt(dh)
    if attention_mask is not None:
        m = attention_mask[:, None, None, :]
        scores = jnp.where(m > 0, -jnp.inf, scores)
    probs = jax.nn.softmax(scores, axis=-1)
    ctx = jnp.einsum("bhqk,bhkd->bhqd", probs, v)
    return ctx.transpose(0, 2, 1, 3).reshape(B, Lq, hidden), probs


# ---------------------------------- main -------------------------------------

if __name__ == "__main__":
    key = jax.random.PRNGKey(0)
    keys = jax.random.split(key, 16)

    def linear_init(kw, kb, fan_in, fan_out):
        bound = 1.0 / math.sqrt(fan_in)
        w = jax.random.uniform(kw, (fan_out, fan_in), jnp.float32, -bound, bound)
        b = jax.random.uniform(kb, (fan_out,), jnp.float32, -bound, bound)
        return w, b

    # ---------------- case 1: B=2, hidden=32, H=4, with mask ----------------
    B, Lq, Lk = 2, 16, 32
    hidden_size, num_heads, ctx_dim = 32, 4, 32

    wq, bq = linear_init(keys[0], keys[1], hidden_size, hidden_size)
    wk, bk = linear_init(keys[2], keys[3], ctx_dim, hidden_size)
    wv, bv = linear_init(keys[4], keys[5], ctx_dim, hidden_size)
    params = dict(wq=wq, bq=bq, wk=wk, bk=bk, wv=wv, bv=bv)

    hidden_states = jax.random.normal(keys[6], (B, Lq, hidden_size), jnp.float32)
    context = jax.random.normal(keys[7], (B, Lk, ctx_dim), jnp.float32)
    # mask: 1 -> masked, 0 -> visible; keep first token visible per row
    attention_mask = (jax.random.uniform(keys[8], (B, Lk)) > 0.7).astype(jnp.float32)
    attention_mask = attention_mask.at[:, 0].set(0.0)

    out, probs = lxmert_attention(hidden_states, context, params, num_heads,
                                  attention_mask=attention_mask,
                                  output_attentions=True)
    out = jax.block_until_ready(out)
    probs = jax.block_until_ready(probs)

    ref_out, ref_probs = _reference(hidden_states, context, params, num_heads,
                                    attention_mask=attention_mask)
    assert out.shape == (B, Lq, hidden_size)
    assert probs.shape == (B, num_heads, Lq, Lk)
    assert jnp.allclose(out, ref_out, atol=2e-3, rtol=2e-3), "out mismatch"
    assert jnp.allclose(probs, ref_probs, atol=2e-3, rtol=2e-3), "probs mismatch"

    # no-probs path (no (B,H,Lq,Lk) HBM stream; approx reciprocal in softmax)
    (out_np,) = lxmert_attention(hidden_states, context, params, num_heads,
                                 attention_mask=attention_mask,
                                 output_attentions=False)
    out_np = jax.block_until_ready(out_np)
    assert jnp.allclose(out_np, ref_out, atol=2e-3, rtol=2e-3), "no-probs mismatch"

    # bf16 MXU path: weights/activations pre-cast to bf16, softmax stays f32
    (out_bf16,) = lxmert_attention(hidden_states, context, params, num_heads,
                                   attention_mask=attention_mask,
                                   output_attentions=False,
                                   compute_dtype=jnp.bfloat16)
    out_bf16 = jax.block_until_ready(out_bf16)
    assert jnp.allclose(out_bf16, ref_out, atol=5e-2, rtol=5e-2), "bf16 mismatch"

    # ------- case 2: B=1, hidden=256, H=8, ctx_dim=192, no mask -------------
    # exercises the head-group grid axis (picked automatically since B==1 and
    # 4 heads x 32 = 128 lanes per group) so both v7x TensorCores get work.
    B2, Lq2, Lk2 = 1, 8, 16
    hidden2, heads2, ctx_dim2 = 256, 8, 192
    wq2, bq2 = linear_init(keys[9], keys[10], hidden2, hidden2)
    wk2, bk2 = linear_init(keys[11], keys[12], ctx_dim2, hidden2)
    wv2, bv2 = linear_init(keys[13], keys[14], ctx_dim2, hidden2)
    params2 = dict(wq=wq2, bq=bq2, wk=wk2, bk=bk2, wv=wv2, bv=bv2)
    hs2 = jax.random.normal(keys[15], (B2, Lq2, hidden2), jnp.float32)
    ctx2 = jax.random.normal(keys[0], (B2, Lk2, ctx_dim2), jnp.float32)

    (out2,) = lxmert_attention(hs2, ctx2, params2, heads2,
                               attention_mask=None, output_attentions=False)
    out2 = jax.block_until_ready(out2)
    ref_out2, _ = _reference(hs2, ctx2, params2, heads2, attention_mask=None)
    assert jnp.allclose(out2, ref_out2, atol=2e-3, rtol=2e-3), "grouped mismatch"

    print("KERNEL_OK")
</pallas_src>

<mosaic_0001>
module attributes {stable_mosaic.version = 11 : i64} {
  func.func @kernel(%arg0: i32, %arg1: i32, %arg2: memref<2x16x32xf32, #tpu.memory_space<vmem>>, %arg3: memref<2x32x32xf32, #tpu.memory_space<vmem>>, %arg4: memref<2x1x32xf32, #tpu.memory_space<vmem>>, %arg5: memref<1x32x32xf32, #tpu.memory_space<vmem>>, %arg6: memref<1x1x32xf32, #tpu.memory_space<vmem>>, %arg7: memref<1x32x32xf32, #tpu.memory_space<vmem>>, %arg8: memref<1x1x32xf32, #tpu.memory_space<vmem>>, %arg9: memref<1x32x32xf32, #tpu.memory_space<vmem>>, %arg10: memref<1x1x32xf32, #tpu.memory_space<vmem>>, %arg11: memref<2x16x32xf32, #tpu.memory_space<vmem>>, %arg12: memref<2x4x16x32xf32, #tpu.memory_space<vmem>>) attributes {dimension_semantics = [#tpu.dimension_semantics<parallel>, #tpu.dimension_semantics<parallel>], iteration_bounds = array<i64: 1, 1>, scalar_prefetch = 0 : i64, scratch_operands = 0 : i64, tpu.core_type = #tpu.core_type<tc>, window_params = [{transform_indices = @transform_0, window_bounds = array<i64: 2, 16, 32>}, {transform_indices = @transform_1, window_bounds = array<i64: 2, 32, 32>}, {transform_indices = @transform_2, window_bounds = array<i64: 2, 1, 32>}, {transform_indices = @transform_3, window_bounds = array<i64: 1, 32, 32>}, {transform_indices = @transform_4, window_bounds = array<i64: 1, 1, 32>}, {transform_indices = @transform_5, window_bounds = array<i64: 1, 32, 32>}, {transform_indices = @transform_6, window_bounds = array<i64: 1, 1, 32>}, {transform_indices = @transform_7, window_bounds = array<i64: 1, 32, 32>}, {transform_indices = @transform_8, window_bounds = array<i64: 1, 1, 32>}, {transform_indices = @transform_9, window_bounds = array<i64: 2, 16, 32>}, {transform_indices = @transform_10, window_bounds = array<i64: 2, 4, 16, 32>}]} {
    %c0 = arith.constant 0 : index
    %c0_0 = arith.constant 0 : index
    %c0_1 = arith.constant 0 : index
    %0 = vector.load %arg2[%c0, %c0_0, %c0_1] : memref<2x16x32xf32, #tpu.memory_space<vmem>>, vector<2x16x32xf32>
    %1 = vector.shape_cast %0 : vector<2x16x32xf32> to vector<32x32xf32>
    %c0_2 = arith.constant 0 : index
    %c0_3 = arith.constant 0 : index
    %c0_4 = arith.constant 0 : index
    %2 = vector.load %arg3[%c0_2, %c0_3, %c0_4] : memref<2x32x32xf32, #tpu.memory_space<vmem>>, vector<2x32x32xf32>
    %3 = vector.shape_cast %2 : vector<2x32x32xf32> to vector<64x32xf32>
    %c0_5 = arith.constant 0 : index
    %c0_6 = arith.constant 0 : index
    %c0_7 = arith.constant 0 : index
    %4 = vector.load %arg5[%c0_5, %c0_6, %c0_7] : memref<1x32x32xf32, #tpu.memory_space<vmem>>, vector<1x32x32xf32>
    %5 = vector.shape_cast %4 : vector<1x32x32xf32> to vector<32x32xf32>
    %cst = arith.constant dense<0.000000e+00> : vector<32x32xf32>
    %6 = tpu.matmul %1, %5, %cst {dimension_numbers = #tpu.dot_dimension_numbers<[1], [1], [0], [0], [0, 0, 1, 0], [], []>} : vector<32x32xf32>, vector<32x32xf32>, vector<32x32xf32> -> vector<32x32xf32>
    %c0_8 = arith.constant 0 : index
    %c0_9 = arith.constant 0 : index
    %c0_10 = arith.constant 0 : index
    %7 = vector.load %arg6[%c0_8, %c0_9, %c0_10] : memref<1x1x32xf32, #tpu.memory_space<vmem>>, vector<1x1x32xf32>
    %8 = vector.shape_cast %7 : vector<1x1x32xf32> to vector<1x32xf32>
    %9 = vector.broadcast %8 : vector<1x32xf32> to vector<32x32xf32>
    %10 = arith.addf %6, %9 : vector<32x32xf32>
    %c0_11 = arith.constant 0 : index
    %c0_12 = arith.constant 0 : index
    %c0_13 = arith.constant 0 : index
    %11 = vector.load %arg7[%c0_11, %c0_12, %c0_13] : memref<1x32x32xf32, #tpu.memory_space<vmem>>, vector<1x32x32xf32>
    %12 = vector.shape_cast %11 : vector<1x32x32xf32> to vector<32x32xf32>
    %cst_14 = arith.constant dense<0.000000e+00> : vector<64x32xf32>
    %13 = tpu.matmul %3, %12, %cst_14 {dimension_numbers = #tpu.dot_dimension_numbers<[1], [1], [0], [0], [0, 0, 1, 0], [], []>} : vector<64x32xf32>, vector<32x32xf32>, vector<64x32xf32> -> vector<64x32xf32>
    %c0_15 = arith.constant 0 : index
    %c0_16 = arith.constant 0 : index
    %c0_17 = arith.constant 0 : index
    %14 = vector.load %arg8[%c0_15, %c0_16, %c0_17] : memref<1x1x32xf32, #tpu.memory_space<vmem>>, vector<1x1x32xf32>
    %15 = vector.shape_cast %14 : vector<1x1x32xf32> to vector<1x32xf32>
    %16 = vector.broadcast %15 : vector<1x32xf32> to vector<64x32xf32>
    %17 = arith.addf %13, %16 : vector<64x32xf32>
    %c0_18 = arith.constant 0 : index
    %c0_19 = arith.constant 0 : index
    %c0_20 = arith.constant 0 : index
    %18 = vector.load %arg9[%c0_18, %c0_19, %c0_20] : memref<1x32x32xf32, #tpu.memory_space<vmem>>, vector<1x32x32xf32>
    %19 = vector.shape_cast %18 : vector<1x32x32xf32> to vector<32x32xf32>
    %cst_21 = arith.constant dense<0.000000e+00> : vector<64x32xf32>
    %20 = tpu.matmul %3, %19, %cst_21 {dimension_numbers = #tpu.dot_dimension_numbers<[1], [1], [0], [0], [0, 0, 1, 0], [], []>} : vector<64x32xf32>, vector<32x32xf32>, vector<64x32xf32> -> vector<64x32xf32>
    %c0_22 = arith.constant 0 : index
    %c0_23 = arith.constant 0 : index
    %c0_24 = arith.constant 0 : index
    %21 = vector.load %arg10[%c0_22, %c0_23, %c0_24] : memref<1x1x32xf32, #tpu.memory_space<vmem>>, vector<1x1x32xf32>
    %22 = vector.shape_cast %21 : vector<1x1x32xf32> to vector<1x32xf32>
    %23 = vector.broadcast %22 : vector<1x32xf32> to vector<64x32xf32>
    %24 = arith.addf %20, %23 : vector<64x32xf32>
    %cst_25 = arith.constant 0.353553385 : f32
    %25 = vector.broadcast %cst_25 : f32 to vector<32x32xf32>
    %26 = arith.mulf %10, %25 : vector<32x32xf32>
    %27 = vector.extract_strided_slice %26 {offsets = [0, 0], sizes = [16, 32], strides = [1, 1]} : vector<32x32xf32> to vector<16x32xf32>
    %28 = vector.extract_strided_slice %17 {offsets = [0, 0], sizes = [32, 32], strides = [1, 1]} : vector<64x32xf32> to vector<32x32xf32>
    %29 = vector.extract_strided_slice %24 {offsets = [0, 0], sizes = [32, 32], strides = [1, 1]} : vector<64x32xf32> to vector<32x32xf32>
    %c0_26 = arith.constant 0 : index
    %c0_27 = arith.constant 0 : index
    %c0_28 = arith.constant 0 : index
    %30 = vector.load %arg4[%c0_26, %c0_27, %c0_28] : memref<2x1x32xf32, #tpu.memory_space<vmem>>, vector<1x1x32xf32>
    %31 = vector.shape_cast %30 : vector<1x1x32xf32> to vector<1x32xf32>
    %32 = vector.extract_strided_slice %27 {offsets = [0, 0], sizes = [16, 8], strides = [1, 1]} : vector<16x32xf32> to vector<16x8xf32>
    %33 = vector.extract_strided_slice %28 {offsets = [0, 0], sizes = [32, 8], strides = [1, 1]} : vector<32x32xf32> to vector<32x8xf32>
    %cst_29 = arith.constant dense<0.000000e+00> : vector<16x32xf32>
    %34 = tpu.matmul %32, %33, %cst_29 {dimension_numbers = #tpu.dot_dimension_numbers<[1], [1], [0], [0], [0, 0, 1, 0], [], []>} : vector<16x8xf32>, vector<32x8xf32>, vector<16x32xf32> -> vector<16x32xf32>
    %35 = vector.broadcast %31 : vector<1x32xf32> to vector<16x32xf32>
    %36 = arith.addf %34, %35 : vector<16x32xf32>
    %cst_30 = arith.constant dense<0xFF800000> : vector<16xf32>
    %37 = vector.multi_reduction <maximumf>, %36, %cst_30 [1] : vector<16x32xf32> to vector<16xf32>
    %38 = vector.shape_cast %37 : vector<16xf32> to vector<16x1xf32>
    %39 = vector.broadcast %38 : vector<16x1xf32> to vector<16x32xf32>
    %40 = arith.subf %36, %39 : vector<16x32xf32>
    %41 = math.exp %40 : vector<16x32xf32>
    %cst_31 = arith.constant dense<0.000000e+00> : vector<16xf32>
    %42 = vector.multi_reduction <add>, %41, %cst_31 [1] : vector<16x32xf32> to vector<16xf32>
    %43 = vector.shape_cast %42 : vector<16xf32> to vector<16x1xf32>
    %44 = vector.broadcast %43 : vector<16x1xf32> to vector<16x32xf32>
    %45 = arith.divf %41, %44 : vector<16x32xf32>
    %c0_32 = arith.constant 0 : index
    %c0_33 = arith.constant 0 : index
    %c0_34 = arith.constant 0 : index
    %c0_35 = arith.constant 0 : index
    %46 = vector.load %arg12[%c0_32, %c0_33, %c0_34, %c0_35] : memref<2x4x16x32xf32, #tpu.memory_space<vmem>>, vector<1x1x16x32xf32>
    %47 = vector.shape_cast %46 : vector<1x1x16x32xf32> to vector<16x32xf32>
    %48 = vector.shape_cast %45 : vector<16x32xf32> to vector<1x1x16x32xf32>
    tpu.vector_store %arg12[%c0_32, %c0_33, %c0_34, %c0_35], %48 {strides = array<i32>} : memref<2x4x16x32xf32, #tpu.memory_space<vmem>>, vector<1x1x16x32xf32>,
    %49 = vector.extract_strided_slice %29 {offsets = [0, 0], sizes = [32, 8], strides = [1, 1]} : vector<32x32xf32> to vector<32x8xf32>
    %cst_36 = arith.constant dense<0.000000e+00> : vector<16x8xf32>
    %50 = tpu.matmul %45, %49, %cst_36 {dimension_numbers = #tpu.dot_dimension_numbers<[1], [0], [0], [1], [0, 0, 1, 1], [], []>} : vector<16x32xf32>, vector<32x8xf32>, vector<16x8xf32> -> vector<16x8xf32>
    %51 = vector.extract_strided_slice %27 {offsets = [0, 8], sizes = [16, 8], strides = [1, 1]} : vector<16x32xf32> to vector<16x8xf32>
    %52 = vector.extract_strided_slice %28 {offsets = [0, 8], sizes = [32, 8], strides = [1, 1]} : vector<32x32xf32> to vector<32x8xf32>
    %cst_37 = arith.constant dense<0.000000e+00> : vector<16x32xf32>
    %53 = tpu.matmul %51, %52, %cst_37 {dimension_numbers = #tpu.dot_dimension_numbers<[1], [1], [0], [0], [0, 0, 1, 0], [], []>} : vector<16x8xf32>, vector<32x8xf32>, vector<16x32xf32> -> vector<16x32xf32>
    %54 = vector.broadcast %31 : vector<1x32xf32> to vector<16x32xf32>
    %55 = arith.addf %53, %54 : vector<16x32xf32>
    %cst_38 = arith.constant dense<0xFF800000> : vector<16xf32>
    %56 = vector.multi_reduction <maximumf>, %55, %cst_38 [1] : vector<16x32xf32> to vector<16xf32>
    %57 = vector.shape_cast %56 : vector<16xf32> to vector<16x1xf32>
    %58 = vector.broadcast %57 : vector<16x1xf32> to vector<16x32xf32>
    %59 = arith.subf %55, %58 : vector<16x32xf32>
    %60 = math.exp %59 : vector<16x32xf32>
    %cst_39 = arith.constant dense<0.000000e+00> : vector<16xf32>
    %61 = vector.multi_reduction <add>, %60, %cst_39 [1] : vector<16x32xf32> to vector<16xf32>
    %62 = vector.shape_cast %61 : vector<16xf32> to vector<16x1xf32>
    %63 = vector.broadcast %62 : vector<16x1xf32> to vector<16x32xf32>
    %64 = arith.divf %60, %63 : vector<16x32xf32>
    %c0_40 = arith.constant 0 : index
    %c1 = arith.constant 1 : index
    %c0_41 = arith.constant 0 : index
    %c0_42 = arith.constant 0 : index
    %65 = vector.load %arg12[%c0_40, %c1, %c0_41, %c0_42] : memref<2x4x16x32xf32, #tpu.memory_space<vmem>>, vector<1x1x16x32xf32>
    %66 = vector.shape_cast %65 : vector<1x1x16x32xf32> to vector<16x32xf32>
    %67 = vector.shape_cast %64 : vector<16x32xf32> to vector<1x1x16x32xf32>
    tpu.vector_store %arg12[%c0_40, %c1, %c0_41, %c0_42], %67 {strides = array<i32>} : memref<2x4x16x32xf32, #tpu.memory_space<vmem>>, vector<1x1x16x32xf32>,
    %68 = vector.extract_strided_slice %29 {offsets = [0, 8], sizes = [32, 8], strides = [1, 1]} : vector<32x32xf32> to vector<32x8xf32>
    %cst_43 = arith.constant dense<0.000000e+00> : vector<16x8xf32>
    %69 = tpu.matmul %64, %68, %cst_43 {dimension_numbers = #tpu.dot_dimension_numbers<[1], [0], [0], [1], [0, 0, 1, 1], [], []>} : vector<16x32xf32>, vector<32x8xf32>, vector<16x8xf32> -> vector<16x8xf32>
    %70 = tpu.concatenate %50, %69 in 1 : vector<16x8xf32>, vector<16x8xf32> -> vector<16x16xf32>
    %c0_44 = arith.constant 0 : index
    %c0_45 = arith.constant 0 : index
    %c0_46 = arith.constant 0 : index
    %71 = vector.load %arg11[%c0_44, %c0_45, %c0_46] : memref<2x16x32xf32, #tpu.memory_space<vmem>>, vector<1x16x16xf32>
    %72 = vector.shape_cast %71 : vector<1x16x16xf32> to vector<16x16xf32>
    %73 = vector.shape_cast %70 : vector<16x16xf32> to vector<1x16x16xf32>
    tpu.vector_store %arg11[%c0_44, %c0_45, %c0_46], %73 {strides = array<i32>} : memref<2x16x32xf32, #tpu.memory_space<vmem>>, vector<1x16x16xf32>,
    %74 = vector.extract_strided_slice %27 {offsets = [0, 16], sizes = [16, 8], strides = [1, 1]} : vector<16x32xf32> to vector<16x8xf32>
    %75 = vector.extract_strided_slice %28 {offsets = [0, 16], sizes = [32, 8], strides = [1, 1]} : vector<32x32xf32> to vector<32x8xf32>
    %cst_47 = arith.constant dense<0.000000e+00> : vector<16x32xf32>
    %76 = tpu.matmul %74, %75, %cst_47 {dimension_numbers = #tpu.dot_dimension_numbers<[1], [1], [0], [0], [0, 0, 1, 0], [], []>} : vector<16x8xf32>, vector<32x8xf32>, vector<16x32xf32> -> vector<16x32xf32>
    %77 = vector.broadcast %31 : vector<1x32xf32> to vector<16x32xf32>
    %78 = arith.addf %76, %77 : vector<16x32xf32>
    %cst_48 = arith.constant dense<0xFF800000> : vector<16xf32>
    %79 = vector.multi_reduction <maximumf>, %78, %cst_48 [1] : vector<16x32xf32> to vector<16xf32>
    %80 = vector.shape_cast %79 : vector<16xf32> to vector<16x1xf32>
    %81 = vector.broadcast %80 : vector<16x1xf32> to vector<16x32xf32>
    %82 = arith.subf %78, %81 : vector<16x32xf32>
    %83 = math.exp %82 : vector<16x32xf32>
    %cst_49 = arith.constant dense<0.000000e+00> : vector<16xf32>
    %84 = vector.multi_reduction <add>, %83, %cst_49 [1] : vector<16x32xf32> to vector<16xf32>
    %85 = vector.shape_cast %84 : vector<16xf32> to vector<16x1xf32>
    %86 = vector.broadcast %85 : vector<16x1xf32> to vector<16x32xf32>
    %87 = arith.divf %83, %86 : vector<16x32xf32>
    %c0_50 = arith.constant 0 : index
    %c2 = arith.constant 2 : index
    %c0_51 = arith.constant 0 : index
    %c0_52 = arith.constant 0 : index
    %88 = vector.load %arg12[%c0_50, %c2, %c0_51, %c0_52] : memref<2x4x16x32xf32, #tpu.memory_space<vmem>>, vector<1x1x16x32xf32>
    %89 = vector.shape_cast %88 : vector<1x1x16x32xf32> to vector<16x32xf32>
    %90 = vector.shape_cast %87 : vector<16x32xf32> to vector<1x1x16x32xf32>
    tpu.vector_store %arg12[%c0_50, %c2, %c0_51, %c0_52], %90 {strides = array<i32>} : memref<2x4x16x32xf32, #tpu.memory_space<vmem>>, vector<1x1x16x32xf32>,
    %91 = vector.extract_strided_slice %29 {offsets = [0, 16], sizes = [32, 8], strides = [1, 1]} : vector<32x32xf32> to vector<32x8xf32>
    %cst_53 = arith.constant dense<0.000000e+00> : vector<16x8xf32>
    %92 = tpu.matmul %87, %91, %cst_53 {dimension_numbers = #tpu.dot_dimension_numbers<[1], [0], [0], [1], [0, 0, 1, 1], [], []>} : vector<16x32xf32>, vector<32x8xf32>, vector<16x8xf32> -> vector<16x8xf32>
    %93 = vector.extract_strided_slice %27 {offsets = [0, 24], sizes = [16, 8], strides = [1, 1]} : vector<16x32xf32> to vector<16x8xf32>
    %94 = vector.extract_strided_slice %28 {offsets = [0, 24], sizes = [32, 8], strides = [1, 1]} : vector<32x32xf32> to vector<32x8xf32>
    %cst_54 = arith.constant dense<0.000000e+00> : vector<16x32xf32>
    %95 = tpu.matmul %93, %94, %cst_54 {dimension_numbers = #tpu.dot_dimension_numbers<[1], [1], [0], [0], [0, 0, 1, 0], [], []>} : vector<16x8xf32>, vector<32x8xf32>, vector<16x32xf32> -> vector<16x32xf32>
    %96 = vector.broadcast %31 : vector<1x32xf32> to vector<16x32xf32>
    %97 = arith.addf %95, %96 : vector<16x32xf32>
    %cst_55 = arith.constant dense<0xFF800000> : vector<16xf32>
    %98 = vector.multi_reduction <maximumf>, %97, %cst_55 [1] : vector<16x32xf32> to vector<16xf32>
    %99 = vector.shape_cast %98 : vector<16xf32> to vector<16x1xf32>
    %100 = vector.broadcast %99 : vector<16x1xf32> to vector<16x32xf32>
    %101 = arith.subf %97, %100 : vector<16x32xf32>
    %102 = math.exp %101 : vector<16x32xf32>
    %cst_56 = arith.constant dense<0.000000e+00> : vector<16xf32>
    %103 = vector.multi_reduction <add>, %102, %cst_56 [1] : vector<16x32xf32> to vector<16xf32>
    %104 = vector.shape_cast %103 : vector<16xf32> to vector<16x1xf32>
    %105 = vector.broadcast %104 : vector<16x1xf32> to vector<16x32xf32>
    %106 = arith.divf %102, %105 : vector<16x32xf32>
    %c0_57 = arith.constant 0 : index
    %c3 = arith.constant 3 : index
    %c0_58 = arith.constant 0 : index
    %c0_59 = arith.constant 0 : index
    %107 = vector.load %arg12[%c0_57, %c3, %c0_58, %c0_59] : memref<2x4x16x32xf32, #tpu.memory_space<vmem>>, vector<1x1x16x32xf32>
    %108 = vector.shape_cast %107 : vector<1x1x16x32xf32> to vector<16x32xf32>
    %109 = vector.shape_cast %106 : vector<16x32xf32> to vector<1x1x16x32xf32>
    tpu.vector_store %arg12[%c0_57, %c3, %c0_58, %c0_59], %109 {strides = array<i32>} : memref<2x4x16x32xf32, #tpu.memory_space<vmem>>, vector<1x1x16x32xf32>,
    %110 = vector.extract_strided_slice %29 {offsets = [0, 24], sizes = [32, 8], strides = [1, 1]} : vector<32x32xf32> to vector<32x8xf32>
    %cst_60 = arith.constant dense<0.000000e+00> : vector<16x8xf32>
    %111 = tpu.matmul %106, %110, %cst_60 {dimension_numbers = #tpu.dot_dimension_numbers<[1], [0], [0], [1], [0, 0, 1, 1], [], []>} : vector<16x32xf32>, vector<32x8xf32>, vector<16x8xf32> -> vector<16x8xf32>
    %112 = tpu.concatenate %92, %111 in 1 : vector<16x8xf32>, vector<16x8xf32> -> vector<16x16xf32>
    %c0_61 = arith.constant 0 : index
    %c0_62 = arith.constant 0 : index
    %c16 = arith.constant 16 : index
    %113 = vector.load %arg11[%c0_61, %c0_62, %c16] : memref<2x16x32xf32, #tpu.memory_space<vmem>>, vector<1x16x16xf32>
    %114 = vector.shape_cast %113 : vector<1x16x16xf32> to vector<16x16xf32>
    %115 = vector.shape_cast %112 : vector<16x16xf32> to vector<1x16x16xf32>
    tpu.vector_store %arg11[%c0_61, %c0_62, %c16], %115 {strides = array<i32>} : memref<2x16x32xf32, #tpu.memory_space<vmem>>, vector<1x16x16xf32>,
    %116 = vector.extract_strided_slice %26 {offsets = [16, 0], sizes = [16, 32], strides = [1, 1]} : vector<32x32xf32> to vector<16x32xf32>
    %117 = vector.extract_strided_slice %17 {offsets = [32, 0], sizes = [32, 32], strides = [1, 1]} : vector<64x32xf32> to vector<32x32xf32>
    %118 = vector.extract_strided_slice %24 {offsets = [32, 0], sizes = [32, 32], strides = [1, 1]} : vector<64x32xf32> to vector<32x32xf32>
    %c1_63 = arith.constant 1 : index
    %c0_64 = arith.constant 0 : index
    %c0_65 = arith.constant 0 : index
    %119 = vector.load %arg4[%c1_63, %c0_64, %c0_65] : memref<2x1x32xf32, #tpu.memory_space<vmem>>, vector<1x1x32xf32>
    %120 = vector.shape_cast %119 : vector<1x1x32xf32> to vector<1x32xf32>
    %121 = vector.extract_strided_slice %116 {offsets = [0, 0], sizes = [16, 8], strides = [1, 1]} : vector<16x32xf32> to vector<16x8xf32>
    %122 = vector.extract_strided_slice %117 {offsets = [0, 0], sizes = [32, 8], strides = [1, 1]} : vector<32x32xf32> to vector<32x8xf32>
    %cst_66 = arith.constant dense<0.000000e+00> : vector<16x32xf32>
    %123 = tpu.matmul %121, %122, %cst_66 {dimension_numbers = #tpu.dot_dimension_numbers<[1], [1], [0], [0], [0, 0, 1, 0], [], []>} : vector<16x8xf32>, vector<32x8xf32>, vector<16x32xf32> -> vector<16x32xf32>
    %124 = vector.broadcast %120 : vector<1x32xf32> to vector<16x32xf32>
    %125 = arith.addf %123, %124 : vector<16x32xf32>
    %cst_67 = arith.constant dense<0xFF800000> : vector<16xf32>
    %126 = vector.multi_reduction <maximumf>, %125, %cst_67 [1] : vector<16x32xf32> to vector<16xf32>
    %127 = vector.shape_cast %126 : vector<16xf32> to vector<16x1xf32>
    %128 = vector.broadcast %127 : vector<16x1xf32> to vector<16x32xf32>
    %129 = arith.subf %125, %128 : vector<16x32xf32>
    %130 = math.exp %129 : vector<16x32xf32>
    %cst_68 = arith.constant dense<0.000000e+00> : vector<16xf32>
    %131 = vector.multi_reduction <add>, %130, %cst_68 [1] : vector<16x32xf32> to vector<16xf32>
    %132 = vector.shape_cast %131 : vector<16xf32> to vector<16x1xf32>
    %133 = vector.broadcast %132 : vector<16x1xf32> to vector<16x32xf32>
    %134 = arith.divf %130, %133 : vector<16x32xf32>
    %c1_69 = arith.constant 1 : index
    %c0_70 = arith.constant 0 : index
    %c0_71 = arith.constant 0 : index
    %c0_72 = arith.constant 0 : index
    %135 = vector.load %arg12[%c1_69, %c0_70, %c0_71, %c0_72] : memref<2x4x16x32xf32, #tpu.memory_space<vmem>>, vector<1x1x16x32xf32>
    %136 = vector.shape_cast %135 : vector<1x1x16x32xf32> to vector<16x32xf32>
    %137 = vector.shape_cast %134 : vector<16x32xf32> to vector<1x1x16x32xf32>
    tpu.vector_store %arg12[%c1_69, %c0_70, %c0_71, %c0_72], %137 {strides = array<i32>} : memref<2x4x16x32xf32, #tpu.memory_space<vmem>>, vector<1x1x16x32xf32>,
    %138 = vector.extract_strided_slice %118 {offsets = [0, 0], sizes = [32, 8], strides = [1, 1]} : vector<32x32xf32> to vector<32x8xf32>
    %cst_73 = arith.constant dense<0.000000e+00> : vector<16x8xf32>
    %139 = tpu.matmul %134, %138, %cst_73 {dimension_numbers = #tpu.dot_dimension_numbers<[1], [0], [0], [1], [0, 0, 1, 1], [], []>} : vector<16x32xf32>, vector<32x8xf32>, vector<16x8xf32> -> vector<16x8xf32>
    %140 = vector.extract_strided_slice %116 {offsets = [0, 8], sizes = [16, 8], strides = [1, 1]} : vector<16x32xf32> to vector<16x8xf32>
    %141 = vector.extract_strided_slice %117 {offsets = [0, 8], sizes = [32, 8], strides = [1, 1]} : vector<32x32xf32> to vector<32x8xf32>
    %cst_74 = arith.constant dense<0.000000e+00> : vector<16x32xf32>
    %142 = tpu.matmul %140, %141, %cst_74 {dimension_numbers = #tpu.dot_dimension_numbers<[1], [1], [0], [0], [0, 0, 1, 0], [], []>} : vector<16x8xf32>, vector<32x8xf32>, vector<16x32xf32> -> vector<16x32xf32>
    %143 = vector.broadcast %120 : vector<1x32xf32> to vector<16x32xf32>
    %144 = arith.addf %142, %143 : vector<16x32xf32>
    %cst_75 = arith.constant dense<0xFF800000> : vector<16xf32>
    %145 = vector.multi_reduction <maximumf>, %144, %cst_75 [1] : vector<16x32xf32> to vector<16xf32>
    %146 = vector.shape_cast %145 : vector<16xf32> to vector<16x1xf32>
    %147 = vector.broadcast %146 : vector<16x1xf32> to vector<16x32xf32>
    %148 = arith.subf %144, %147 : vector<16x32xf32>
    %149 = math.exp %148 : vector<16x32xf32>
    %cst_76 = arith.constant dense<0.000000e+00> : vector<16xf32>
    %150 = vector.multi_reduction <add>, %149, %cst_76 [1] : vector<16x32xf32> to vector<16xf32>
    %151 = vector.shape_cast %150 : vector<16xf32> to vector<16x1xf32>
    %152 = vector.broadcast %151 : vector<16x1xf32> to vector<16x32xf32>
    %153 = arith.divf %149, %152 : vector<16x32xf32>
    %c1_77 = arith.constant 1 : index
    %c1_78 = arith.constant 1 : index
    %c0_79 = arith.constant 0 : index
    %c0_80 = arith.constant 0 : index
    %154 = vector.load %arg12[%c1_77, %c1_78, %c0_79, %c0_80] : memref<2x4x16x32xf32, #tpu.memory_space<vmem>>, vector<1x1x16x32xf32>
    %155 = vector.shape_cast %154 : vector<1x1x16x32xf32> to vector<16x32xf32>
    %156 = vector.shape_cast %153 : vector<16x32xf32> to vector<1x1x16x32xf32>
    tpu.vector_store %arg12[%c1_77, %c1_78, %c0_79, %c0_80], %156 {strides = array<i32>} : memref<2x4x16x32xf32, #tpu.memory_space<vmem>>, vector<1x1x16x32xf32>,
    %157 = vector.extract_strided_slice %118 {offsets = [0, 8], sizes = [32, 8], strides = [1, 1]} : vector<32x32xf32> to vector<32x8xf32>
    %cst_81 = arith.constant dense<0.000000e+00> : vector<16x8xf32>
    %158 = tpu.matmul %153, %157, %cst_81 {dimension_numbers = #tpu.dot_dimension_numbers<[1], [0], [0], [1], [0, 0, 1, 1], [], []>} : vector<16x32xf32>, vector<32x8xf32>, vector<16x8xf32> -> vector<16x8xf32>
    %159 = tpu.concatenate %139, %158 in 1 : vector<16x8xf32>, vector<16x8xf32> -> vector<16x16xf32>
    %c1_82 = arith.constant 1 : index
    %c0_83 = arith.constant 0 : index
    %c0_84 = arith.constant 0 : index
    %160 = vector.load %arg11[%c1_82, %c0_83, %c0_84] : memref<2x16x32xf32, #tpu.memory_space<vmem>>, vector<1x16x16xf32>
    %161 = vector.shape_cast %160 : vector<1x16x16xf32> to vector<16x16xf32>
    %162 = vector.shape_cast %159 : vector<16x16xf32> to vector<1x16x16xf32>
    tpu.vector_store %arg11[%c1_82, %c0_83, %c0_84], %162 {strides = array<i32>} : memref<2x16x32xf32, #tpu.memory_space<vmem>>, vector<1x16x16xf32>,
    %163 = vector.extract_strided_slice %116 {offsets = [0, 16], sizes = [16, 8], strides = [1, 1]} : vector<16x32xf32> to vector<16x8xf32>
    %164 = vector.extract_strided_slice %117 {offsets = [0, 16], sizes = [32, 8], strides = [1, 1]} : vector<32x32xf32> to vector<32x8xf32>
    %cst_85 = arith.constant dense<0.000000e+00> : vector<16x32xf32>
    %165 = tpu.matmul %163, %164, %cst_85 {dimension_numbers = #tpu.dot_dimension_numbers<[1], [1], [0], [0], [0, 0, 1, 0], [], []>} : vector<16x8xf32>, vector<32x8xf32>, vector<16x32xf32> -> vector<16x32xf32>
    %166 = vector.broadcast %120 : vector<1x32xf32> to vector<16x32xf32>
    %167 = arith.addf %165, %166 : vector<16x32xf32>
    %cst_86 = arith.constant dense<0xFF800000> : vector<16xf32>
    %168 = vector.multi_reduction <maximumf>, %167, %cst_86 [1] : vector<16x32xf32> to vector<16xf32>
    %169 = vector.shape_cast %168 : vector<16xf32> to vector<16x1xf32>
    %170 = vector.broadcast %169 : vector<16x1xf32> to vector<16x32xf32>
    %171 = arith.subf %167, %170 : vector<16x32xf32>
    %172 = math.exp %171 : vector<16x32xf32>
    %cst_87 = arith.constant dense<0.000000e+00> : vector<16xf32>
    %173 = vector.multi_reduction <add>, %172, %cst_87 [1] : vector<16x32xf32> to vector<16xf32>
    %174 = vector.shape_cast %173 : vector<16xf32> to vector<16x1xf32>
    %175 = vector.broadcast %174 : vector<16x1xf32> to vector<16x32xf32>
    %176 = arith.divf %172, %175 : vector<16x32xf32>
    %c1_88 = arith.constant 1 : index
    %c2_89 = arith.constant 2 : index
    %c0_90 = arith.constant 0 : index
    %c0_91 = arith.constant 0 : index
    %177 = vector.load %arg12[%c1_88, %c2_89, %c0_90, %c0_91] : memref<2x4x16x32xf32, #tpu.memory_space<vmem>>, vector<1x1x16x32xf32>
    %178 = vector.shape_cast %177 : vector<1x1x16x32xf32> to vector<16x32xf32>
    %179 = vector.shape_cast %176 : vector<16x32xf32> to vector<1x1x16x32xf32>
    tpu.vector_store %arg12[%c1_88, %c2_89, %c0_90, %c0_91], %179 {strides = array<i32>} : memref<2x4x16x32xf32, #tpu.memory_space<vmem>>, vector<1x1x16x32xf32>,
    %180 = vector.extract_strided_slice %118 {offsets = [0, 16], sizes = [32, 8], strides = [1, 1]} : vector<32x32xf32> to vector<32x8xf32>
    %cst_92 = arith.constant dense<0.000000e+00> : vector<16x8xf32>
    %181 = tpu.matmul %176, %180, %cst_92 {dimension_numbers = #tpu.dot_dimension_numbers<[1], [0], [0], [1], [0, 0, 1, 1], [], []>} : vector<16x32xf32>, vector<32x8xf32>, vector<16x8xf32> -> vector<16x8xf32>
    %182 = vector.extract_strided_slice %116 {offsets = [0, 24], sizes = [16, 8], strides = [1, 1]} : vector<16x32xf32> to vector<16x8xf32>
    %183 = vector.extract_strided_slice %117 {offsets = [0, 24], sizes = [32, 8], strides = [1, 1]} : vector<32x32xf32> to vector<32x8xf32>
    %cst_93 = arith.constant dense<0.000000e+00> : vector<16x32xf32>
    %184 = tpu.matmul %182, %183, %cst_93 {dimension_numbers = #tpu.dot_dimension_numbers<[1], [1], [0], [0], [0, 0, 1, 0], [], []>} : vector<16x8xf32>, vector<32x8xf32>, vector<16x32xf32> -> vector<16x32xf32>
    %185 = vector.broadcast %120 : vector<1x32xf32> to vector<16x32xf32>
    %186 = arith.addf %184, %185 : vector<16x32xf32>
    %cst_94 = arith.constant dense<0xFF800000> : vector<16xf32>
    %187 = vector.multi_reduction <maximumf>, %186, %cst_94 [1] : vector<16x32xf32> to vector<16xf32>
    %188 = vector.shape_cast %187 : vector<16xf32> to vector<16x1xf32>
    %189 = vector.broadcast %188 : vector<16x1xf32> to vector<16x32xf32>
    %190 = arith.subf %186, %189 : vector<16x32xf32>
    %191 = math.exp %190 : vector<16x32xf32>
    %cst_95 = arith.constant dense<0.000000e+00> : vector<16xf32>
    %192 = vector.multi_reduction <add>, %191, %cst_95 [1] : vector<16x32xf32> to vector<16xf32>
    %193 = vector.shape_cast %192 : vector<16xf32> to vector<16x1xf32>
    %194 = vector.broadcast %193 : vector<16x1xf32> to vector<16x32xf32>
    %195 = arith.divf %191, %194 : vector<16x32xf32>
    %c1_96 = arith.constant 1 : index
    %c3_97 = arith.constant 3 : index
    %c0_98 = arith.constant 0 : index
    %c0_99 = arith.constant 0 : index
    %196 = vector.load %arg12[%c1_96, %c3_97, %c0_98, %c0_99] : memref<2x4x16x32xf32, #tpu.memory_space<vmem>>, vector<1x1x16x32xf32>
    %197 = vector.shape_cast %196 : vector<1x1x16x32xf32> to vector<16x32xf32>
    %198 = vector.shape_cast %195 : vector<16x32xf32> to vector<1x1x16x32xf32>
    tpu.vector_store %arg12[%c1_96, %c3_97, %c0_98, %c0_99], %198 {strides = array<i32>} : memref<2x4x16x32xf32, #tpu.memory_space<vmem>>, vector<1x1x16x32xf32>,
    %199 = vector.extract_strided_slice %118 {offsets = [0, 24], sizes = [32, 8], strides = [1, 1]} : vector<32x32xf32> to vector<32x8xf32>
    %cst_100 = arith.constant dense<0.000000e+00> : vector<16x8xf32>
    %200 = tpu.matmul %195, %199, %cst_100 {dimension_numbers = #tpu.dot_dimension_numbers<[1], [0], [0], [1], [0, 0, 1, 1], [], []>} : vector<16x32xf32>, vector<32x8xf32>, vector<16x8xf32> -> vector<16x8xf32>
    %201 = tpu.concatenate %181, %200 in 1 : vector<16x8xf32>, vector<16x8xf32> -> vector<16x16xf32>
    %c1_101 = arith.constant 1 : index
    %c0_102 = arith.constant 0 : index
    %c16_103 = arith.constant 16 : index
    %202 = vector.load %arg11[%c1_101, %c0_102, %c16_103] : memref<2x16x32xf32, #tpu.memory_space<vmem>>, vector<1x16x16xf32>
    %203 = vector.shape_cast %202 : vector<1x16x16xf32> to vector<16x16xf32>
    %204 = vector.shape_cast %201 : vector<16x16xf32> to vector<1x16x16xf32>
    tpu.vector_store %arg11[%c1_101, %c0_102, %c16_103], %204 {strides = array<i32>} : memref<2x16x32xf32, #tpu.memory_space<vmem>>, vector<1x16x16xf32>,
    return
  }
  func.func @transform_0(%arg0: i32, %arg1: i32) -> (i32, i32, i32) {
    %c0_i32 = arith.constant 0 : i32
    %c0_i32_0 = arith.constant 0 : i32
    %c0_i32_1 = arith.constant 0 : i32
    return %arg1, %c0_i32, %c0_i32_0 : i32, i32, i32
  }
  func.func @transform_1(%arg0: i32, %arg1: i32) -> (i32, i32, i32) {
    %c0_i32 = arith.constant 0 : i32
    %c0_i32_0 = arith.constant 0 : i32
    %c0_i32_1 = arith.constant 0 : i32
    return %arg1, %c0_i32, %c0_i32_0 : i32, i32, i32
  }
  func.func @transform_2(%arg0: i32, %arg1: i32) -> (i32, i32, i32) {
    %c0_i32 = arith.constant 0 : i32
    %c0_i32_0 = arith.constant 0 : i32
    %c0_i32_1 = arith.constant 0 : i32
    return %arg1, %c0_i32, %c0_i32_0 : i32, i32, i32
  }
  func.func @transform_3(%arg0: i32, %arg1: i32) -> (i32, i32, i32) {
    %c0_i32 = arith.constant 0 : i32
    %c0_i32_0 = arith.constant 0 : i32
    %c0_i32_1 = arith.constant 0 : i32
    return %arg0, %c0_i32, %c0_i32_0 : i32, i32, i32
  }
  func.func @transform_4(%arg0: i32, %arg1: i32) -> (i32, i32, i32) {
    %c0_i32 = arith.constant 0 : i32
    %c0_i32_0 = arith.constant 0 : i32
    %c0_i32_1 = arith.constant 0 : i32
    return %arg0, %c0_i32, %c0_i32_0 : i32, i32, i32
  }
  func.func @transform_5(%arg0: i32, %arg1: i32) -> (i32, i32, i32) {
    %c0_i32 = arith.constant 0 : i32
    %c0_i32_0 = arith.constant 0 : i32
    %c0_i32_1 = arith.constant 0 : i32
    return %arg0, %c0_i32, %c0_i32_0 : i32, i32, i32
  }
  func.func @transform_6(%arg0: i32, %arg1: i32) -> (i32, i32, i32) {
    %c0_i32 = arith.constant 0 : i32
    %c0_i32_0 = arith.constant 0 : i32
    %c0_i32_1 = arith.constant 0 : i32
    return %arg0, %c0_i32, %c0_i32_0 : i32, i32, i32
  }
  func.func @transform_7(%arg0: i32, %arg1: i32) -> (i32, i32, i32) {
    %c0_i32 = arith.constant 0 : i32
    %c0_i32_0 = arith.constant 0 : i32
    %c0_i32_1 = arith.constant 0 : i32
    return %arg0, %c0_i32, %c0_i32_0 : i32, i32, i32
  }
  func.func @transform_8(%arg0: i32, %arg1: i32) -> (i32, i32, i32) {
    %c0_i32 = arith.constant 0 : i32
    %c0_i32_0 = arith.constant 0 : i32
    %c0_i32_1 = arith.constant 0 : i32
    return %arg0, %c0_i32, %c0_i32_0 : i32, i32, i32
  }
  func.func @transform_9(%arg0: i32, %arg1: i32) -> (i32, i32, i32) {
    %c0_i32 = arith.constant 0 : i32
    %c0_i32_0 = arith.constant 0 : i32
    return %arg1, %c0_i32, %arg0 : i32, i32, i32
  }
  func.func @transform_10(%arg0: i32, %arg1: i32) -> (i32, i32, i32, i32) {
    %c0_i32 = arith.constant 0 : i32
    %c0_i32_0 = arith.constant 0 : i32
    %c0_i32_1 = arith.constant 0 : i32
    return %arg1, %arg0, %c0_i32, %c0_i32_0 : i32, i32, i32, i32
  }
}

</mosaic_0001>

<llo_original>
// kernel: tpu_custom_call.1
$region0: #{tpu_custom_call.1}
  #allocation0 [shape = 'u32[]', space=smem, size = 0x4, offset = 0x4, fixed_abs, tag = 'smem constant byte address 0x4 - core index']
  #allocation1 [shape = 'u32[72,128]{1,0:T(1,128)}', space=vmem, size = 0x9000, scoped, tag = 'internal scratch']
  %s0 = inlined_call_operand.hbm [shape: f32[2,16,32], index: 0, kind: input, shape index: {}]
  %s1 = inlined_call_operand.hbm [shape: f32[2,32,32], index: 1, kind: input, shape index: {}]
  %s2 = inlined_call_operand.hbm [shape: f32[2,1,32], index: 2, kind: input, shape index: {}]
  %s3 = inlined_call_operand.hbm [shape: f32[1,32,32], index: 3, kind: input, shape index: {}]
  %s4 = inlined_call_operand.vmem [shape: f32[1,1,32], index: 4, kind: input, shape index: {}]
  %s5 = inlined_call_operand.hbm [shape: f32[1,32,32], index: 5, kind: input, shape index: {}]
  %s6 = inlined_call_operand.vmem [shape: f32[1,1,32], index: 6, kind: input, shape index: {}]
  %s7 = inlined_call_operand.hbm [shape: f32[1,32,32], index: 7, kind: input, shape index: {}]
  %s8 = inlined_call_operand.vmem [shape: f32[1,1,32], index: 8, kind: input, shape index: {}]
  %s9 = inlined_call_operand.hbm [shape: f32[2,16,32], index: 9, kind: output, shape index: {0}]
  %s10 = inlined_call_operand.hbm [shape: f32[2,4,16,32], index: 10, kind: output, shape index: {1}]
  %11 = xla_tuple %s9, %s10
  %s12 = sld [smem:[#allocation0]]
  $region78: #{tpu_custom_call.1} parent=0
    _
  %s14 = ssub.s32 1, %s12
  %s15 = scalar_select 0, %s14, %s12
  $region1: #{tpu_custom_call.1} parent=0
    #allocation2 [shape = 'u8[16384]{0}', space=vmem, size = 0x4000, scoped, tag = 'input window, operand 0, single buffered']
    #allocation3 [shape = 's32[1]{0}', space=sflag, size = 0x4, scoped, tag = 'scoped memory for tpu_custom_call.1']
    #allocation4 [shape = 's32[1]{0}', space=sflag, size = 0x4, scoped, tag = 'scoped memory for tpu_custom_call.1']
    #allocation5 [shape = 'u8[32768]{0}', space=vmem, size = 0x8000, scoped, tag = 'input window, operand 1, single buffered']
    #allocation6 [shape = 's32[1]{0}', space=sflag, size = 0x4, scoped, tag = 'scoped memory for tpu_custom_call.1']
    #allocation7 [shape = 'u8[1024]{0}', space=vmem, size = 0x400, scoped, tag = 'input window, operand 2, single buffered']
    #allocation8 [shape = 'u8[16384]{0}', space=vmem, size = 0x4000, scoped, tag = 'input window, operand 3, single buffered']
    #allocation9 [shape = 's32[1]{0}', space=sflag, size = 0x4, scoped, tag = 'scoped memory for tpu_custom_call.1']
    #allocation10 [shape = 'u8[16384]{0}', space=vmem, size = 0x4000, scoped, tag = 'input window, operand 5, single buffered']
    #allocation11 [shape = 'u8[16384]{0}', space=vmem, size = 0x4000, scoped, tag = 'input window, operand 7, single buffered']
    #allocation12 [shape = 's32[1]{0}', space=sflag, size = 0x4, scoped, tag = 'scoped memory for tpu_custom_call.1']
    #allocation13 [shape = 'u8[16384]{0}', space=vmem, size = 0x4000, scoped, tag = 'output window, operand 0, single buffered']
    #allocation14 [shape = 'u8[65536]{0}', space=vmem, size = 0x10000, scoped, tag = 'output window, operand 1, single buffered']
    #allocation15 [shape = 's32[1]{0}', space=sflag, size = 0x4, scoped, tag = 'scoped memory for tpu_custom_call.1']
    %16 = vsyncpa [#allocation3], 0
    %17 = vsyncpa [#allocation6], 0
    %18 = vsyncpa [#allocation9], 0
    %19 = vsyncpa [#allocation12], 0
    %20 = vsyncpa [#allocation4], 0
    %21 = vsyncpa [#allocation15], 0
    // Predicated region
    $region2: #{tpu_custom_call.1} parent=1 // pred_check
      _
    $region3: #{tpu_custom_call.1} parent=1 // pred_check_branch
      %23 = sbr.rel (0) target = $region5
    $region4: #{tpu_custom_call.1} parent=1 // pred_region
      %25 = vsyncadd [#allocation3], 0
      %s26 = sshll.u32 %s0, 4
      %s27 = int_to_ptr.hbm [resolvable:$true] %s26
      %s28 = sshll.u32 [#allocation2], 4
      %s29 = int_to_ptr.vmem [resolvable:$true] %s28
      %34 = dma.hbm_to_vmem [thread:$0]  %s27, 512, %s29, [#allocation3], 128, 128, 8
    $region5: #{tpu_custom_call.1} parent=1 // pred_fallthru
      _
    // Predicated region
    $region6: #{tpu_custom_call.1} parent=1 // pred_check
      _
    $region7: #{tpu_custom_call.1} parent=1 // pred_check_branch
      %36 = sbr.rel (0) target = $region9
    $region8: #{tpu_custom_call.1} parent=1 // pred_region
      %38 = vsyncadd [#allocation6], 0
      %s39 = sshll.u32 %s1, 4
      %s40 = int_to_ptr.hbm [resolvable:$true] %s39
      %s41 = sshll.u32 [#allocation5], 4
      %s42 = int_to_ptr.vmem [resolvable:$true] %s41
      %47 = dma.hbm_to_vmem [thread:$0]  %s40, 1024, %s42, [#allocation6], 128, 128, 8
    $region9: #{tpu_custom_call.1} parent=1 // pred_fallthru
      _
    // Predicated region
    $region10: #{tpu_custom_call.1} parent=1 // pred_check
      _
    $region11: #{tpu_custom_call.1} parent=1 // pred_check_branch
      %49 = sbr.rel (0) target = $region13
    $region12: #{tpu_custom_call.1} parent=1 // pred_region
      %51 = vsyncadd [#allocation6], 0
      %s52 = sshll.u32 %s2, 4
      %s53 = int_to_ptr.hbm [resolvable:$true] %s52
      %s54 = sshll.u32 [#allocation7], 4
      %s55 = int_to_ptr.vmem [resolvable:$true] %s54
      %60 = dma.hbm_to_vmem [thread:$0]  %s53, 32, %s55, [#allocation6], 16, 16, 1
    $region13: #{tpu_custom_call.1} parent=1 // pred_fallthru
      _
    // Predicated region
    $region14: #{tpu_custom_call.1} parent=1 // pred_check
      _
    $region15: #{tpu_custom_call.1} parent=1 // pred_check_branch
      %62 = sbr.rel (0) target = $region17
    $region16: #{tpu_custom_call.1} parent=1 // pred_region
      %64 = vsyncadd [#allocation9], 0
      %s65 = sshll.u32 %s3, 4
      %s66 = int_to_ptr.hbm [resolvable:$true] %s65
      %s67 = sshll.u32 [#allocation8], 4
      %s68 = int_to_ptr.vmem [resolvable:$true] %s67
      %73 = dma.hbm_to_vmem [thread:$0]  %s66, 512, %s68, [#allocation9], 128, 128, 8
    $region17: #{tpu_custom_call.1} parent=1 // pred_fallthru
      _
    // Predicated region
    $region18: #{tpu_custom_call.1} parent=1 // pred_check
      _
    $region19: #{tpu_custom_call.1} parent=1 // pred_check_branch
      %75 = sbr.rel (0) target = $region21
    $region20: #{tpu_custom_call.1} parent=1 // pred_region
      _
    $region21: #{tpu_custom_call.1} parent=1 // pred_fallthru
      _
    // Predicated region
    $region22: #{tpu_custom_call.1} parent=1 // pred_check
      _
    $region23: #{tpu_custom_call.1} parent=1 // pred_check_branch
      %77 = sbr.rel (0) target = $region25
    $region24: #{tpu_custom_call.1} parent=1 // pred_region
      %79 = vsyncadd [#allocation9], 0
      %s80 = sshll.u32 %s5, 4
      %s81 = int_to_ptr.hbm [resolvable:$true] %s80
      %s82 = sshll.u32 [#allocation10], 4
      %s83 = int_to_ptr.vmem [resolvable:$true] %s82
      %88 = dma.hbm_to_vmem [thread:$0]  %s81, 512, %s83, [#allocation9], 128, 128, 8
    $region25: #{tpu_custom_call.1} parent=1 // pred_fallthru
      _
    // Predicated region
    $region26: #{tpu_custom_call.1} parent=1 // pred_check
      _
    $region27: #{tpu_custom_call.1} parent=1 // pred_check_branch
      %90 = sbr.rel (0) target = $region29
    $region28: #{tpu_custom_call.1} parent=1 // pred_region
      _
    $region29: #{tpu_custom_call.1} parent=1 // pred_fallthru
      _
    // Predicated region
    $region30: #{tpu_custom_call.1} parent=1 // pred_check
      _
    $region31: #{tpu_custom_call.1} parent=1 // pred_check_branch
      %92 = sbr.rel (0) target = $region33
    $region32: #{tpu_custom_call.1} parent=1 // pred_region
      %94 = vsyncadd [#allocation12], 0
      %s95 = sshll.u32 %s7, 4
      %s96 = int_to_ptr.hbm [resolvable:$true] %s95
      %s97 = sshll.u32 [#allocation11], 4
      %s98 = int_to_ptr.vmem [resolvable:$true] %s97
      %103 = dma.hbm_to_vmem [thread:$0]  %s96, 512, %s98, [#allocation12], 128, 128, 8
    $region33: #{tpu_custom_call.1} parent=1 // pred_fallthru
      _
    // Predicated region
    $region34: #{tpu_custom_call.1} parent=1 // pred_check
      _
    $region35: #{tpu_custom_call.1} parent=1 // pred_check_branch
      %105 = sbr.rel (0) target = $region37
    $region36: #{tpu_custom_call.1} parent=1 // pred_region
      _
    $region37: #{tpu_custom_call.1} parent=1 // pred_fallthru
      _
    // Predicated region
    $region38: #{tpu_custom_call.1} parent=1 // pred_check
      _
    $region39: #{tpu_custom_call.1} parent=1 // pred_check_branch
      %107 = sbr.rel (0) target = $region41
    $region40: #{tpu_custom_call.1} parent=1 // pred_region
      %109 = dma.done [#allocation3], 512
    $region41: #{tpu_custom_call.1} parent=1 // pred_fallthru
      _
    // Predicated region
    $region42: #{tpu_custom_call.1} parent=1 // pred_check
      _
    $region43: #{tpu_custom_call.1} parent=1 // pred_check_branch
      %111 = sbr.rel (0) target = $region45
    $region44: #{tpu_custom_call.1} parent=1 // pred_region
      %113 = dma.done [#allocation6], 1024
    $region45: #{tpu_custom_call.1} parent=1 // pred_fallthru
      _
    // Predicated region
    $region46: #{tpu_custom_call.1} parent=1 // pred_check
      _
    $region47: #{tpu_custom_call.1} parent=1 // pred_check_branch
      %115 = sbr.rel (0) target = $region49
    $region48: #{tpu_custom_call.1} parent=1 // pred_region
      %117 = dma.done [#allocation6], 32
    $region49: #{tpu_custom_call.1} parent=1 // pred_fallthru
      _
    // Predicated region
    $region50: #{tpu_custom_call.1} parent=1 // pred_check
      _
    $region51: #{tpu_custom_call.1} parent=1 // pred_check_branch
      %119 = sbr.rel (0) target = $region53
    $region52: #{tpu_custom_call.1} parent=1 // pred_region
      %121 = dma.done [#allocation9], 512
    $region53: #{tpu_custom_call.1} parent=1 // pred_fallthru
      _
    // Predicated region
    $region54: #{tpu_custom_call.1} parent=1 // pred_check
      _
    $region55: #{tpu_custom_call.1} parent=1 // pred_check_branch
      %123 = sbr.rel (0) target = $region57
    $region56: #{tpu_custom_call.1} parent=1 // pred_region
      %125 = dma.done [#allocation9], 512
    $region57: #{tpu_custom_call.1} parent=1 // pred_fallthru
      _
    // Predicated region
    $region58: #{tpu_custom_call.1} parent=1 // pred_check
      _
    $region59: #{tpu_custom_call.1} parent=1 // pred_check_branch
      %127 = sbr.rel (0) target = $region61
    $region60: #{tpu_custom_call.1} parent=1 // pred_region
      %129 = dma.done [#allocation12], 512
    $region61: #{tpu_custom_call.1} parent=1 // pred_fallthru
      _
    %v130 = vld [vmem:[#allocation2] sm:$0xff]
    %v131 = vld [vmem:[#allocation2 + $0x8] sm:$0xff]
    %v132 = vld [vmem:[#allocation2 + $0x10] sm:$0xff]
    %v133 = vld [vmem:[#allocation2 + $0x18] sm:$0xff]
    %v134 = vld [vmem:[#allocation5] sm:$0xff]
    %v135 = vld [vmem:[#allocation5 + $0x8] sm:$0xff]
    %v136 = vld [vmem:[#allocation5 + $0x10] sm:$0xff]
    %v137 = vld [vmem:[#allocation5 + $0x18] sm:$0xff]
    %v138 = vld [vmem:[#allocation5 + $0x20] sm:$0xff]
    %v139 = vld [vmem:[#allocation5 + $0x28] sm:$0xff]
    %v140 = vld [vmem:[#allocation5 + $0x30] sm:$0xff]
    %v141 = vld [vmem:[#allocation5 + $0x38] sm:$0xff]
    %v142 = vld [vmem:[#allocation8] sm:$0xff]
    %v143 = vld [vmem:[#allocation8 + $0x8] sm:$0xff]
    %v144 = vld [vmem:[#allocation8 + $0x10] sm:$0xff]
    %v145 = vld [vmem:[#allocation8 + $0x18] sm:$0xff]
    %v146 = vld [vmem:[%s4] sm:$0x1]
    %v148 = vperm.slane %v146, 0
    %vm150 = vcmask 261120
    %v152 = vsel %vm150, %v130, 0
    %v155 = vsel %vm150, %v131, 0
    %v158 = vsel %vm150, %v132, 0
    %v161 = vsel %vm150, %v133, 0
    %v164 = vsel %vm150, %v142, 0
    %v167 = vsel %vm150, %v143, 0
    %v170 = vsel %vm150, %v144, 0
    %v173 = vsel %vm150, %v145, 0
    %175 = vmatpush.xpose.msra.mxu0 0.0
    %176 = vmatpush.xpose.msra.mxu0 0.0
    %177 = vmatpush.xpose.msra.mxu0 0.0
    %178 = vmatpush.xpose.msra.mxu0 0.0
    %179 = vmatpush.xpose.msra.mxu0 0.0
    %180 = vmatpush.xpose.msra.mxu0 0.0
    %181 = vmatpush.xpose.msra.mxu0 0.0
    %182 = vmatpush.xpose.msra.mxu0 0.0
    %183 = vmatpush.xpose.msra.mxu0 0.0
    %184 = vmatpush.xpose.msra.mxu0 0.0
    %185 = vmatpush.xpose.msra.mxu0 0.0
    %186 = vmatpush.xpose.msra.mxu0 0.0
    %187 = vmatpush.xpose.msra.mxu0 %v173
    %188 = vmatpush.xpose.msra.mxu0 %v170
    %189 = vmatpush.xpose.msra.mxu0 %v167
    %190 = vmatpush.xpose.msra.mxu0 %v164
    %191 = vmatmul.f32.gmra.mxu0 %v152
    %v192 = vpop.f32.mrf.mxu0
    %v193 = vadd.f32 %v148, %v192
    %194 = vmatmul.f32.gmra.mxu0 %v155
    %v195 = vpop.f32.mrf.mxu0
    %v196 = vadd.f32 %v148, %v195
    %197 = vmatmul.f32.gmra.mxu0 %v158
    %v198 = vpop.f32.mrf.mxu0
    %v199 = vadd.f32 %v148, %v198
    %200 = vmatmul.f32.gmra.mxu0 %v161
    %v201 = vpop.f32.mrf.mxu0
    %v202 = vadd.f32 %v148, %v201
    %203 = vdwg.mxu0
    %v204 = vld [vmem:[#allocation10] sm:$0xff]
    %v205 = vld [vmem:[#allocation10 + $0x8] sm:$0xff]
    %v206 = vld [vmem:[#allocation10 + $0x10] sm:$0xff]
    %v207 = vld [vmem:[#allocation10 + $0x18] sm:$0xff]
    %v208 = vld [vmem:[%s6] sm:$0x1]
    %v210 = vperm.slane %v208, 0
    %v213 = vsel %vm150, %v134, 0
    %v216 = vsel %vm150, %v135, 0
    %v219 = vsel %vm150, %v136, 0
    %v222 = vsel %vm150, %v137, 0
    %v225 = vsel %vm150, %v138, 0
    %v228 = vsel %vm150, %v139, 0
    %v231 = vsel %vm150, %v140, 0
    %v234 = vsel %vm150, %v141, 0
    %v237 = vsel %vm150, %v204, 0
    %v240 = vsel %vm150, %v205, 0
    %v243 = vsel %vm150, %v206, 0
    %v246 = vsel %vm150, %v207, 0
    %248 = vmatpush.xpose.msra.mxu0 0.0
    %249 = vmatpush.xpose.msra.mxu0 0.0
    %250 = vmatpush.xpose.msra.mxu0 0.0
    %251 = vmatpush.xpose.msra.mxu0 0.0
    %252 = vmatpush.xpose.msra.mxu0 0.0
    %253 = vmatpush.xpose.msra.mxu0 0.0
    %254 = vmatpush.xpose.msra.mxu0 0.0
    %255 = vmatpush.xpose.msra.mxu0 0.0
    %256 = vmatpush.xpose.msra.mxu0 0.0
    %257 = vmatpush.xpose.msra.mxu0 0.0
    %258 = vmatpush.xpose.msra.mxu0 0.0
    %259 = vmatpush.xpose.msra.mxu0 0.0
    %260 = vmatpush.xpose.msra.mxu0 %v246
    %261 = vmatpush.xpose.msra.mxu0 %v243
    %262 = vmatpush.xpose.msra.mxu0 %v240
    %263 = vmatpush.xpose.msra.mxu0 %v237
    %264 = vmatmul.f32.gmra.mxu0 %v213
    %v265 = vpop.f32.mrf.mxu0
    %v266 = vadd.f32 %v210, %v265
    %267 = vmatmul.f32.gmra.mxu0 %v216
    %v268 = vpop.f32.mrf.mxu0
    %v269 = vadd.f32 %v210, %v268
    %270 = vmatmul.f32.gmra.mxu0 %v219
    %v271 = vpop.f32.mrf.mxu0
    %v272 = vadd.f32 %v210, %v271
    %273 = vmatmul.f32.gmra.mxu0 %v222
    %v274 = vpop.f32.mrf.mxu0
    %v275 = vadd.f32 %v210, %v274
    %276 = vmatmul.f32.gmra.mxu0 %v225
    %v277 = vpop.f32.mrf.mxu0
    %v278 = vadd.f32 %v210, %v277
    %279 = vmatmul.f32.gmra.mxu0 %v228
    %v280 = vpop.f32.mrf.mxu0
    %v281 = vadd.f32 %v210, %v280
    %282 = vmatmul.f32.gmra.mxu0 %v231
    %v283 = vpop.f32.mrf.mxu0
    %v284 = vadd.f32 %v210, %v283
    %285 = vmatmul.f32.gmra.mxu0 %v234
    %v286 = vpop.f32.mrf.mxu0
    %v287 = vadd.f32 %v210, %v286
    %288 = vdwg.mxu0
    %v289 = vld [vmem:[#allocation11] sm:$0xff]
    %v290 = vld [vmem:[#allocation11 + $0x8] sm:$0xff]
    %v291 = vld [vmem:[#allocation11 + $0x10] sm:$0xff]
    %v292 = vld [vmem:[#allocation11 + $0x18] sm:$0xff]
    %v293 = vld [vmem:[%s8] sm:$0x1]
    %v295 = vperm.slane %v293, 0
    %v298 = vsel %vm150, %v289, 0
    %v301 = vsel %vm150, %v290, 0
    %v304 = vsel %vm150, %v291, 0
    %v307 = vsel %vm150, %v292, 0
    %309 = vmatpush.xpose.msra.mxu0 0.0
    %310 = vmatpush.xpose.msra.mxu0 0.0
    %311 = vmatpush.xpose.msra.mxu0 0.0
    %312 = vmatpush.xpose.msra.mxu0 0.0
    %313 = vmatpush.xpose.msra.mxu0 0.0
    %314 = vmatpush.xpose.msra.mxu0 0.0
    %315 = vmatpush.xpose.msra.mxu0 0.0
    %316 = vmatpush.xpose.msra.mxu0 0.0
    %317 = vmatpush.xpose.msra.mxu0 0.0
    %318 = vmatpush.xpose.msra.mxu0 0.0
    %319 = vmatpush.xpose.msra.mxu0 0.0
    %320 = vmatpush.xpose.msra.mxu0 0.0
    %321 = vmatpush.xpose.msra.mxu0 %v307
    %322 = vmatpush.xpose.msra.mxu0 %v304
    %323 = vmatpush.xpose.msra.mxu0 %v301
    %324 = vmatpush.xpose.msra.mxu0 %v298
    %325 = vmatmul.f32.gmra.mxu0 %v213
    %v326 = vpop.f32.mrf.mxu0
    %v327 = vadd.f32 %v295, %v326
    %328 = vmatmul.f32.gmra.mxu0 %v216
    %v329 = vpop.f32.mrf.mxu0
    %v330 = vadd.f32 %v295, %v329
    %331 = vmatmul.f32.gmra.mxu0 %v219
    %v332 = vpop.f32.mrf.mxu0
    %v333 = vadd.f32 %v295, %v332
    %334 = vmatmul.f32.gmra.mxu0 %v222
    %v335 = vpop.f32.mrf.mxu0
    %v336 = vadd.f32 %v295, %v335
    %337 = vmatmul.f32.gmra.mxu0 %v225
    %v338 = vpop.f32.mrf.mxu0
    %v339 = vadd.f32 %v295, %v338
    %340 = vmatmul.f32.gmra.mxu0 %v228
    %v341 = vpop.f32.mrf.mxu0
    %v342 = vadd.f32 %v295, %v341
    %343 = vmatmul.f32.gmra.mxu0 %v231
    %v344 = vpop.f32.mrf.mxu0
    %v345 = vadd.f32 %v295, %v344
    %346 = vmatmul.f32.gmra.mxu0 %v234
    %v347 = vpop.f32.mrf.mxu0
    %v348 = vadd.f32 %v295, %v347
    %349 = vdwg.mxu0
    %v350 = vmul.f32 %v193, 0.35355338
    %v351 = vmul.f32 %v196, 0.35355338
    %v352 = vmul.f32 %v199, 0.35355338
    %v353 = vmul.f32 %v202, 0.35355338
    %v354 = vld [vmem:[#allocation7] sm:$0x1]
    %v356 = vperm.slane %v354, 0
    %vm358 = vcmask 64512
    %v360 = vsel %vm358, %v350, 0
    %v363 = vsel %vm358, %v351, 0
    %v366 = vsel %vm358, %v266, 0
    %v369 = vsel %vm358, %v269, 0
    %v372 = vsel %vm358, %v272, 0
    %v375 = vsel %vm358, %v275, 0
    %377 = vmatpush.xpose.msra.mxu0 0.0
    %378 = vmatpush.xpose.msra.mxu0 0.0
    %379 = vmatpush.xpose.msra.mxu0 0.0
    %380 = vmatpush.xpose.msra.mxu0 0.0
    %381 = vmatpush.xpose.msra.mxu0 0.0
    %382 = vmatpush.xpose.msra.mxu0 0.0
    %383 = vmatpush.xpose.msra.mxu0 0.0
    %384 = vmatpush.xpose.msra.mxu0 0.0
    %385 = vmatpush.xpose.msra.mxu0 0.0
    %386 = vmatpush.xpose.msra.mxu0 0.0
    %387 = vmatpush.xpose.msra.mxu0 0.0
    %388 = vmatpush.xpose.msra.mxu0 0.0
    %389 = vmatpush.xpose.msra.mxu0 %v375
    %390 = vmatpush.xpose.msra.mxu0 %v372
    %391 = vmatpush.xpose.msra.mxu0 %v369
    %392 = vmatpush.xpose.msra.mxu0 %v366
    %393 = vmatmul.f32.gmra.mxu0 %v360
    %v394 = vpop.f32.mrf.mxu0
    %v395 = vadd.f32 %v356, %v394
    %396 = vmatmul.f32.gmra.mxu0 %v363
    %v397 = vpop.f32.mrf.mxu0
    %v398 = vadd.f32 %v356, %v397
    %399 = vdwg.mxu0
    %v400 = vsel %vm150, %v395, -inf
    %401 = vmax.xlane.f32.xlu0 %v400
    %v402 = vpop.xlane.xlu0 %401
    %v403 = vsel %vm150, %v398, -inf
    %404 = vmax.xlane.f32.xlu0 %v403
    %v405 = vpop.xlane.xlu0 %404
    %v406 = vsub.f32 %v395, %v402
    %v407 = vsub.f32 %v398, %v405
    %v408 = vmul.f32 %v406, 1.442695
    %v409 = vpow.pop %v408
    %v410 = vmul.f32 %v407, 1.442695
    %v411 = vpow.pop %v410
    %v412 = vsel %vm150, %v409, 0.0
    %413 = vadd.xlane.f32.xlu0 %v412
    %v414 = vpop.xlane.xlu0 %413
    %v415 = vsel %vm150, %v411, 0.0
    %416 = vadd.xlane.f32.xlu0 %v415
    %v417 = vpop.xlane.xlu0 %416
    %v418 = vrcp.pop %v414
    %v419 = vmul.f32 %v414, %v418
    %v420 = vsub.f32 1.0, %v419
    %v421 = vmul.f32 %v418, %v420
    %v422 = vadd.f32 %v418, %v421
    %vm423 = vweird.f32 %v414
    %vm424 = vweird.f32 %v418
    %vm425 = vmor %vm423, %vm424
    %v426 = vsel %vm425, %v418, %v422
    %v427 = vand.u32 2147483647, %v414
    %vm428 = vcmp.eq.f32.partialorder %v427, 8.507059e+37
    %v429 = vand.u32 %v414, 2147483648
    %v430 = vor.u32 1.1754944e-38, %v429
    %v431 = vsel %vm428, %v430, %v426
    %v432 = vmul.f32 %v409, %v431
    %v433 = vrcp.pop %v417
    %v434 = vmul.f32 %v417, %v433
    %v435 = vsub.f32 1.0, %v434
    %v436 = vmul.f32 %v433, %v435
    %v437 = vadd.f32 %v433, %v436
    %vm438 = vweird.f32 %v417
    %vm439 = vweird.f32 %v433
    %vm440 = vmor %vm438, %vm439
    %v441 = vsel %vm440, %v433, %v437
    %v442 = vand.u32 2147483647, %v417
    %vm443 = vcmp.eq.f32.partialorder %v442, 8.507059e+37
    %v444 = vand.u32 %v417, 2147483648
    %v445 = vor.u32 1.1754944e-38, %v444
    %v446 = vsel %vm443, %v445, %v441
    %v447 = vmul.f32 %v411, %v446
    %448 = vst.msk [vmem:[#allocation14] sm:$0xff] %vm150, %v432
    %449 = vst.msk [vmem:[#allocation14 + $0x8] sm:$0xff] %vm150, %v447
    %v451 = vsel %vm150, %v432, 0
    %v454 = vsel %vm150, %v447, 0
    %456 = vmatpush.msra.mxu0 0.0
    %457 = vmatpush.msra.mxu0 0.0
    %458 = vmatpush.msra.mxu0 0.0
    %459 = vmatpush.msra.mxu0 0.0
    %460 = vmatpush.msra.mxu0 0.0
    %461 = vmatpush.msra.mxu0 0.0
    %462 = vmatpush.msra.mxu0 0.0
    %463 = vmatpush.msra.mxu0 0.0
    %464 = vmatpush.msra.mxu0 0.0
    %465 = vmatpush.msra.mxu0 0.0
    %466 = vmatpush.msra.mxu0 0.0
    %467 = vmatpush.msra.mxu0 0.0
    %468 = vmatpush.msra.mxu0 %v336
    %469 = vmatpush.msra.mxu0 %v333
    %470 = vmatpush.msra.mxu0 %v330
    %471 = vmatpush.msra.mxu0 %v327
    %472 = vmatmul.f32.gmra.mxu0 %v451
    %v473 = vpop.f32.mrf.mxu0
    %v474 = vadd.f32 0.0, %v473
    %475 = vmatmul.f32.gmra.mxu0 %v454
    %v476 = vpop.f32.mrf.mxu0
    %v477 = vadd.f32 0.0, %v476
    %478 = vdwg.mxu0
    %479 = vrot.lane.b32.xlu0 %v350, 120
    %v480 = vpop.permute.xlu0 %479
    %481 = vrot.lane.b32.xlu0 %v351, 120
    %v482 = vpop.permute.xlu0 %481
    %483 = vrot.lane.b32.xlu0 %v266, 120
    %v484 = vpop.permute.xlu0 %483
    %485 = vrot.lane.b32.xlu0 %v269, 120
    %v486 = vpop.permute.xlu0 %485
    %487 = vrot.lane.b32.xlu0 %v272, 120
    %v488 = vpop.permute.xlu0 %487
    %489 = vrot.lane.b32.xlu0 %v275, 120
    %v490 = vpop.permute.xlu0 %489
    %v491 = vsel %vm358, %v480, 0
    %v493 = vsel %vm358, %v482, 0
    %v495 = vsel %vm358, %v484, 0
    %v497 = vsel %vm358, %v486, 0
    %v499 = vsel %vm358, %v488, 0
    %v501 = vsel %vm358, %v490, 0
    %503 = vmatpush.xpose.msra.mxu0 0.0
    %504 = vmatpush.xpose.msra.mxu0 0.0
    %505 = vmatpush.xpose.msra.mxu0 0.0
    %506 = vmatpush.xpose.msra.mxu0 0.0
    %507 = vmatpush.xpose.msra.mxu0 0.0
    %508 = vmatpush.xpose.msra.mxu0 0.0
    %509 = vmatpush.xpose.msra.mxu0 0.0
    %510 = vmatpush.xpose.msra.mxu0 0.0
    %511 = vmatpush.xpose.msra.mxu0 0.0
    %512 = vmatpush.xpose.msra.mxu0 0.0
    %513 = vmatpush.xpose.msra.mxu0 0.0
    %514 = vmatpush.xpose.msra.mxu0 0.0
    %515 = vmatpush.xpose.msra.mxu0 %v501
    %516 = vmatpush.xpose.msra.mxu0 %v499
    %517 = vmatpush.xpose.msra.mxu0 %v497
    %518 = vmatpush.xpose.msra.mxu0 %v495
    %519 = vmatmul.f32.gmra.mxu0 %v491
    %v520 = vpop.f32.mrf.mxu0
    %v521 = vadd.f32 %v356, %v520
    %522 = vmatmul.f32.gmra.mxu0 %v493
    %v523 = vpop.f32.mrf.mxu0
    %v524 = vadd.f32 %v356, %v523
    %525 = vdwg.mxu0
    %v526 = vsel %vm150, %v521, -inf
    %527 = vmax.xlane.f32.xlu0 %v526
    %v528 = vpop.xlane.xlu0 %527
    %v529 = vsel %vm150, %v524, -inf
    %530 = vmax.xlane.f32.xlu0 %v529
    %v531 = vpop.xlane.xlu0 %530
    %v532 = vsub.f32 %v521, %v528
    %v533 = vsub.f32 %v524, %v531
    %v534 = vmul.f32 %v532, 1.442695
    %v535 = vpow.pop %v534
    %v536 = vmul.f32 %v533, 1.442695
    %v537 = vpow.pop %v536
    %v538 = vsel %vm150, %v535, 0.0
    %539 = vadd.xlane.f32.xlu0 %v538
    %v540 = vpop.xlane.xlu0 %539
    %v541 = vsel %vm150, %v537, 0.0
    %542 = vadd.xlane.f32.xlu0 %v541
    %v543 = vpop.xlane.xlu0 %542
    %v544 = vrcp.pop %v540
    %v545 = vmul.f32 %v540, %v544
    %v546 = vsub.f32 1.0, %v545
    %v547 = vmul.f32 %v544, %v546
    %v548 = vadd.f32 %v544, %v547
    %vm549 = vweird.f32 %v540
    %vm550 = vweird.f32 %v544
    %vm551 = vmor %vm549, %vm550
    %v552 = vsel %vm551, %v544, %v548
    %v553 = vand.u32 2147483647, %v540
    %vm554 = vcmp.eq.f32.partialorder %v553, 8.507059e+37
    %v555 = vand.u32 %v540, 2147483648
    %v556 = vor.u32 1.1754944e-38, %v555
    %v557 = vsel %vm554, %v556, %v552
    %v558 = vmul.f32 %v535, %v557
    %v559 = vrcp.pop %v543
    %v560 = vmul.f32 %v543, %v559
    %v561 = vsub.f32 1.0, %v560
    %v562 = vmul.f32 %v559, %v561
    %v563 = vadd.f32 %v559, %v562
    %vm564 = vweird.f32 %v543
    %vm565 = vweird.f32 %v559
    %vm566 = vmor %vm564, %vm565
    %v567 = vsel %vm566, %v559, %v563
    %v568 = vand.u32 2147483647, %v543
    %vm569 = vcmp.eq.f32.partialorder %v568, 8.507059e+37
    %v570 = vand.u32 %v543, 2147483648
    %v571 = vor.u32 1.1754944e-38, %v570
    %v572 = vsel %vm569, %v571, %v567
    %v573 = vmul.f32 %v537, %v572
    %s574 = scalar_lea.vmem [#allocation14], 16
    %575 = vst.msk [vmem:[%s574] sm:$0xff] %vm150, %v558
    %576 = vst.msk [vmem:[%s574 + $0x8] sm:$0xff] %vm150, %v573
    %581 = vrot.lane.b32.xlu0 %v327, 120
    %v582 = vpop.permute.xlu0 %581
    %583 = vrot.lane.b32.xlu0 %v330, 120
    %v584 = vpop.permute.xlu0 %583
    %585 = vrot.lane.b32.xlu0 %v333, 120
    %v586 = vpop.permute.xlu0 %585
    %587 = vrot.lane.b32.xlu0 %v336, 120
    %v588 = vpop.permute.xlu0 %587
    %v594 = vsel %vm150, %v558, 0
    %v597 = vsel %vm150, %v573, 0
    %599 = vmatpush.msra.mxu0 0.0
    %600 = vmatpush.msra.mxu0 0.0
    %601 = vmatpush.msra.mxu0 0.0
    %602 = vmatpush.msra.mxu0 0.0
    %603 = vmatpush.msra.mxu0 0.0
    %604 = vmatpush.msra.mxu0 0.0
    %605 = vmatpush.msra.mxu0 0.0
    %606 = vmatpush.msra.mxu0 0.0
    %607 = vmatpush.msra.mxu0 0.0
    %608 = vmatpush.msra.mxu0 0.0
    %609 = vmatpush.msra.mxu0 0.0
    %610 = vmatpush.msra.mxu0 0.0
    %611 = vmatpush.msra.mxu0 %v588
    %612 = vmatpush.msra.mxu0 %v586
    %613 = vmatpush.msra.mxu0 %v584
    %614 = vmatpush.msra.mxu0 %v582
    %615 = vmatmul.f32.gmra.mxu0 %v594
    %v616 = vpop.f32.mrf.mxu0
    %v617 = vadd.f32 0.0, %v616
    %618 = vmatmul.f32.gmra.mxu0 %v597
    %v619 = vpop.f32.mrf.mxu0
    %v620 = vadd.f32 0.0, %v619
    %621 = vdwg.mxu0
    %624 = vrot.lane.b32.xlu0 %v617, 8
    %v625 = vpop.permute.xlu0 %624
    %626 = vrot.lane.b32.xlu0 %v620, 8
    %v627 = vpop.permute.xlu0 %626
    %v630 = vsel %vm358, %v474, %v625
    %v631 = vsel %vm358, %v477, %v627
    %vm632 = vcmask 130048
    %633 = vst.msk [vmem:[#allocation13] sm:$0xff] %vm632, %v630
    %634 = vst.msk [vmem:[#allocation13 + $0x8] sm:$0xff] %vm632, %v631
    %635 = vrot.lane.b32.xlu0 %v350, 112
    %v636 = vpop.permute.xlu0 %635
    %637 = vrot.lane.b32.xlu0 %v351, 112
    %v638 = vpop.permute.xlu0 %637
    %639 = vrot.lane.b32.xlu0 %v266, 112
    %v640 = vpop.permute.xlu0 %639
    %641 = vrot.lane.b32.xlu0 %v269, 112
    %v642 = vpop.permute.xlu0 %641
    %643 = vrot.lane.b32.xlu0 %v272, 112
    %v644 = vpop.permute.xlu0 %643
    %645 = vrot.lane.b32.xlu0 %v275, 112
    %v646 = vpop.permute.xlu0 %645
    %v647 = vsel %vm358, %v636, 0
    %v649 = vsel %vm358, %v638, 0
    %v651 = vsel %vm358, %v640, 0
    %v653 = vsel %vm358, %v642, 0
    %v655 = vsel %vm358, %v644, 0
    %v657 = vsel %vm358, %v646, 0
    %659 = vmatpush.xpose.msra.mxu0 0.0
    %660 = vmatpush.xpose.msra.mxu0 0.0
    %661 = vmatpush.xpose.msra.mxu0 0.0
    %662 = vmatpush.xpose.msra.mxu0 0.0
    %663 = vmatpush.xpose.msra.mxu0 0.0
    %664 = vmatpush.xpose.msra.mxu0 0.0
    %665 = vmatpush.xpose.msra.mxu0 0.0
    %666 = vmatpush.xpose.msra.mxu0 0.0
    %667 = vmatpush.xpose.msra.mxu0 0.0
    %668 = vmatpush.xpose.msra.mxu0 0.0
    %669 = vmatpush.xpose.msra.mxu0 0.0
    %670 = vmatpush.xpose.msra.mxu0 0.0
    %671 = vmatpush.xpose.msra.mxu0 %v657
    %672 = vmatpush.xpose.msra.mxu0 %v655
    %673 = vmatpush.xpose.msra.mxu0 %v653
    %674 = vmatpush.xpose.msra.mxu0 %v651
    %675 = vmatmul.f32.gmra.mxu0 %v647
    %v676 = vpop.f32.mrf.mxu0
    %v677 = vadd.f32 %v356, %v676
    %678 = vmatmul.f32.gmra.mxu0 %v649
    %v679 = vpop.f32.mrf.mxu0
    %v680 = vadd.f32 %v356, %v679
    %681 = vdwg.mxu0
    %v682 = vsel %vm150, %v677, -inf
    %683 = vmax.xlane.f32.xlu0 %v682
    %v684 = vpop.xlane.xlu0 %683
    %v685 = vsel %vm150, %v680, -inf
    %686 = vmax.xlane.f32.xlu0 %v685
    %v687 = vpop.xlane.xlu0 %686
    %v688 = vsub.f32 %v677, %v684
    %v689 = vsub.f32 %v680, %v687
    %v690 = vmul.f32 %v688, 1.442695
    %v691 = vpow.pop %v690
    %v692 = vmul.f32 %v689, 1.442695
    %v693 = vpow.pop %v692
    %v694 = vsel %vm150, %v691, 0.0
    %695 = vadd.xlane.f32.xlu0 %v694
    %v696 = vpop.xlane.xlu0 %695
    %v697 = vsel %vm150, %v693, 0.0
    %698 = vadd.xlane.f32.xlu0 %v697
    %v699 = vpop.xlane.xlu0 %698
    %v700 = vrcp.pop %v696
    %v701 = vmul.f32 %v696, %v700
    %v702 = vsub.f32 1.0, %v701
    %v703 = vmul.f32 %v700, %v702
    %v704 = vadd.f32 %v700, %v703
    %vm705 = vweird.f32 %v696
    %vm706 = vweird.f32 %v700
    %vm707 = vmor %vm705, %vm706
    %v708 = vsel %vm707, %v700, %v704
    %v709 = vand.u32 2147483647, %v696
    %vm710 = vcmp.eq.f32.partialorder %v709, 8.507059e+37
    %v711 = vand.u32 %v696, 2147483648
    %v712 = vor.u32 1.1754944e-38, %v711
    %v713 = vsel %vm710, %v712, %v708
    %v714 = vmul.f32 %v691, %v713
    %v715 = vrcp.pop %v699
    %v716 = vmul.f32 %v699, %v715
    %v717 = vsub.f32 1.0, %v716
    %v718 = vmul.f32 %v715, %v717
    %v719 = vadd.f32 %v715, %v718
    %vm720 = vweird.f32 %v699
    %vm721 = vweird.f32 %v715
    %vm722 = vmor %vm720, %vm721
    %v723 = vsel %vm722, %v715, %v719
    %v724 = vand.u32 2147483647, %v699
    %vm725 = vcmp.eq.f32.partialorder %v724, 8.507059e+37
    %v726 = vand.u32 %v699, 2147483648
    %v727 = vor.u32 1.1754944e-38, %v726
    %v728 = vsel %vm725, %v727, %v723
    %v729 = vmul.f32 %v693, %v728
    %s730 = scalar_lea.vmem [#allocation14], 32
    %731 = vst.msk [vmem:[%s730] sm:$0xff] %vm150, %v714
    %732 = vst.msk [vmem:[%s730 + $0x8] sm:$0xff] %vm150, %v729
    %733 = vrot.lane.b32.xlu0 %v327, 112
    %v734 = vpop.permute.xlu0 %733
    %735 = vrot.lane.b32.xlu0 %v330, 112
    %v736 = vpop.permute.xlu0 %735
    %737 = vrot.lane.b32.xlu0 %v333, 112
    %v738 = vpop.permute.xlu0 %737
    %739 = vrot.lane.b32.xlu0 %v336, 112
    %v740 = vpop.permute.xlu0 %739
    %v746 = vsel %vm150, %v714, 0
    %v749 = vsel %vm150, %v729, 0
    %751 = vmatpush.msra.mxu0 0.0
    %752 = vmatpush.msra.mxu0 0.0
    %753 = vmatpush.msra.mxu0 0.0
    %754 = vmatpush.msra.mxu0 0.0
    %755 = vmatpush.msra.mxu0 0.0
    %756 = vmatpush.msra.mxu0 0.0
    %757 = vmatpush.msra.mxu0 0.0
    %758 = vmatpush.msra.mxu0 0.0
    %759 = vmatpush.msra.mxu0 0.0
    %760 = vmatpush.msra.mxu0 0.0
    %761 = vmatpush.msra.mxu0 0.0
    %762 = vmatpush.msra.mxu0 0.0
    %763 = vmatpush.msra.mxu0 %v740
    %764 = vmatpush.msra.mxu0 %v738
    %765 = vmatpush.msra.mxu0 %v736
    %766 = vmatpush.msra.mxu0 %v734
    %767 = vmatmul.f32.gmra.mxu0 %v746
    %v768 = vpop.f32.mrf.mxu0
    %v769 = vadd.f32 0.0, %v768
    %770 = vmatmul.f32.gmra.mxu0 %v749
    %v771 = vpop.f32.mrf.mxu0
    %v772 = vadd.f32 0.0, %v771
    %773 = vdwg.mxu0
    %774 = vrot.lane.b32.xlu0 %v350, 104
    %v775 = vpop.permute.xlu0 %774
    %776 = vrot.lane.b32.xlu0 %v351, 104
    %v777 = vpop.permute.xlu0 %776
    %778 = vrot.lane.b32.xlu0 %v266, 104
    %v779 = vpop.permute.xlu0 %778
    %780 = vrot.lane.b32.xlu0 %v269, 104
    %v781 = vpop.permute.xlu0 %780
    %782 = vrot.lane.b32.xlu0 %v272, 104
    %v783 = vpop.permute.xlu0 %782
    %784 = vrot.lane.b32.xlu0 %v275, 104
    %v785 = vpop.permute.xlu0 %784
    %v786 = vsel %vm358, %v775, 0
    %v788 = vsel %vm358, %v777, 0
    %v790 = vsel %vm358, %v779, 0
    %v792 = vsel %vm358, %v781, 0
    %v794 = vsel %vm358, %v783, 0
    %v796 = vsel %vm358, %v785, 0
    %798 = vmatpush.xpose.msra.mxu0 0.0
    %799 = vmatpush.xpose.msra.mxu0 0.0
    %800 = vmatpush.xpose.msra.mxu0 0.0
    %801 = vmatpush.xpose.msra.mxu0 0.0
    %802 = vmatpush.xpose.msra.mxu0 0.0
    %803 = vmatpush.xpose.msra.mxu0 0.0
    %804 = vmatpush.xpose.msra.mxu0 0.0
    %805 = vmatpush.xpose.msra.mxu0 0.0
    %806 = vmatpush.xpose.msra.mxu0 0.0
    %807 = vmatpush.xpose.msra.mxu0 0.0
    %808 = vmatpush.xpose.msra.mxu0 0.0
    %809 = vmatpush.xpose.msra.mxu0 0.0
    %810 = vmatpush.xpose.msra.mxu0 %v796
    %811 = vmatpush.xpose.msra.mxu0 %v794
    %812 = vmatpush.xpose.msra.mxu0 %v792
    %813 = vmatpush.xpose.msra.mxu0 %v790
    %814 = vmatmul.f32.gmra.mxu0 %v786
    %v815 = vpop.f32.mrf.mxu0
    %v816 = vadd.f32 %v356, %v815
    %817 = vmatmul.f32.gmra.mxu0 %v788
    %v818 = vpop.f32.mrf.mxu0
    %v819 = vadd.f32 %v356, %v818
    %820 = vdwg.mxu0
    %v821 = vsel %vm150, %v816, -inf
    %822 = vmax.xlane.f32.xlu0 %v821
    %v823 = vpop.xlane.xlu0 %822
    %v824 = vsel %vm150, %v819, -inf
    %825 = vmax.xlane.f32.xlu0 %v824
    %v826 = vpop.xlane.xlu0 %825
    %v827 = vsub.f32 %v816, %v823
    %v828 = vsub.f32 %v819, %v826
    %v829 = vmul.f32 %v827, 1.442695
    %v830 = vpow.pop %v829
    %v831 = vmul.f32 %v828, 1.442695
    %v832 = vpow.pop %v831
    %v833 = vsel %vm150, %v830, 0.0
    %834 = vadd.xlane.f32.xlu0 %v833
    %v835 = vpop.xlane.xlu0 %834
    %v836 = vsel %vm150, %v832, 0.0
    %837 = vadd.xlane.f32.xlu0 %v836
    %v838 = vpop.xlane.xlu0 %837
    %v839 = vrcp.pop %v835
    %v840 = vmul.f32 %v835, %v839
    %v841 = vsub.f32 1.0, %v840
    %v842 = vmul.f32 %v839, %v841
    %v843 = vadd.f32 %v839, %v842
    %vm844 = vweird.f32 %v835
    %vm845 = vweird.f32 %v839
    %vm846 = vmor %vm844, %vm845
    %v847 = vsel %vm846, %v839, %v843
    %v848 = vand.u32 2147483647, %v835
    %vm849 = vcmp.eq.f32.partialorder %v848, 8.507059e+37
    %v850 = vand.u32 %v835, 2147483648
    %v851 = vor.u32 1.1754944e-38, %v850
    %v852 = vsel %vm849, %v851, %v847
    %v853 = vmul.f32 %v830, %v852
    %v854 = vrcp.pop %v838
    %v855 = vmul.f32 %v838, %v854
    %v856 = vsub.f32 1.0, %v855
    %v857 = vmul.f32 %v854, %v856
    %v858 = vadd.f32 %v854, %v857
    %vm859 = vweird.f32 %v838
    %vm860 = vweird.f32 %v854
    %vm861 = vmor %vm859, %vm860
    %v862 = vsel %vm861, %v854, %v858
    %v863 = vand.u32 2147483647, %v838
    %vm864 = vcmp.eq.f32.partialorder %v863, 8.507059e+37
    %v865 = vand.u32 %v838, 2147483648
    %v866 = vor.u32 1.1754944e-38, %v865
    %v867 = vsel %vm864, %v866, %v862
    %v868 = vmul.f32 %v832, %v867
    %s869 = scalar_lea.vmem [#allocation14], 48
    %870 = vst.msk [vmem:[%s869] sm:$0xff] %vm150, %v853
    %871 = vst.msk [vmem:[%s869 + $0x8] sm:$0xff] %vm150, %v868
    %872 = vrot.lane.b32.xlu0 %v327, 104
    %v873 = vpop.permute.xlu0 %872
    %874 = vrot.lane.b32.xlu0 %v330, 104
    %v875 = vpop.permute.xlu0 %874
    %876 = vrot.lane.b32.xlu0 %v333, 104
    %v877 = vpop.permute.xlu0 %876
    %878 = vrot.lane.b32.xlu0 %v336, 104
    %v879 = vpop.permute.xlu0 %878
    %v885 = vsel %vm150, %v853, 0
    %v888 = vsel %vm150, %v868, 0
    %890 = vmatpush.msra.mxu0 0.0
    %891 = vmatpush.msra.mxu0 0.0
    %892 = vmatpush.msra.mxu0 0.0
    %893 = vmatpush.msra.mxu0 0.0
    %894 = vmatpush.msra.mxu0 0.0
    %895 = vmatpush.msra.mxu0 0.0
    %896 = vmatpush.msra.mxu0 0.0
    %897 = vmatpush.msra.mxu0 0.0
    %898 = vmatpush.msra.mxu0 0.0
    %899 = vmatpush.msra.mxu0 0.0
    %900 = vmatpush.msra.mxu0 0.0
    %901 = vmatpush.msra.mxu0 0.0
    %902 = vmatpush.msra.mxu0 %v879
    %903 = vmatpush.msra.mxu0 %v877
    %904 = vmatpush.msra.mxu0 %v875
    %905 = vmatpush.msra.mxu0 %v873
    %906 = vmatmul.f32.gmra.mxu0 %v885
    %v907 = vpop.f32.mrf.mxu0
    %v908 = vadd.f32 0.0, %v907
    %909 = vmatmul.f32.gmra.mxu0 %v888
    %v910 = vpop.f32.mrf.mxu0
    %v911 = vadd.f32 0.0, %v910
    %912 = vdwg.mxu0
    %915 = vrot.lane.b32.xlu0 %v908, 8
    %v916 = vpop.permute.xlu0 %915
    %917 = vrot.lane.b32.xlu0 %v911, 8
    %v918 = vpop.permute.xlu0 %917
    %v921 = vsel %vm358, %v769, %v916
    %v922 = vsel %vm358, %v772, %v918
    %925 = vrot.lane.b32.xlu0 %v921, 16
    %v926 = vpop.permute.xlu0 %925
    %927 = vrot.lane.b32.xlu0 %v922, 16
    %v928 = vpop.permute.xlu0 %927
    %vm931 = vcmask 261248
    %932 = vst.msk [vmem:[#allocation13] sm:$0xff] %vm931, %v926
    %933 = vst.msk [vmem:[#allocation13 + $0x8] sm:$0xff] %vm931, %v928
    %s934 = scalar_lea.vmem [#allocation7], 1
    %v935 = vld [vmem:[%s934] sm:$0x1]
    %v937 = vperm.slane %v935, 0
    %v940 = vsel %vm358, %v352, 0
    %v943 = vsel %vm358, %v353, 0
    %v946 = vsel %vm358, %v278, 0
    %v949 = vsel %vm358, %v281, 0
    %v952 = vsel %vm358, %v284, 0
    %v955 = vsel %vm358, %v287, 0
    %957 = vmatpush.xpose.msra.mxu0 0.0
    %958 = vmatpush.xpose.msra.mxu0 0.0
    %959 = vmatpush.xpose.msra.mxu0 0.0
    %960 = vmatpush.xpose.msra.mxu0 0.0
    %961 = vmatpush.xpose.msra.mxu0 0.0
    %962 = vmatpush.xpose.msra.mxu0 0.0
    %963 = vmatpush.xpose.msra.mxu0 0.0
    %964 = vmatpush.xpose.msra.mxu0 0.0
    %965 = vmatpush.xpose.msra.mxu0 0.0
    %966 = vmatpush.xpose.msra.mxu0 0.0
    %967 = vmatpush.xpose.msra.mxu0 0.0
    %968 = vmatpush.xpose.msra.mxu0 0.0
    %969 = vmatpush.xpose.msra.mxu0 %v955
    %970 = vmatpush.xpose.msra.mxu0 %v952
    %971 = vmatpush.xpose.msra.mxu0 %v949
    %972 = vmatpush.xpose.msra.mxu0 %v946
    %973 = vmatmul.f32.gmra.mxu0 %v940
    %v974 = vpop.f32.mrf.mxu0
    %v975 = vadd.f32 %v937, %v974
    %976 = vmatmul.f32.gmra.mxu0 %v943
    %v977 = vpop.f32.mrf.mxu0
    %v978 = vadd.f32 %v937, %v977
    %979 = vdwg.mxu0
    %v980 = vsel %vm150, %v975, -inf
    %981 = vmax.xlane.f32.xlu0 %v980
    %v982 = vpop.xlane.xlu0 %981
    %v983 = vsel %vm150, %v978, -inf
    %984 = vmax.xlane.f32.xlu0 %v983
    %v985 = vpop.xlane.xlu0 %984
    %v986 = vsub.f32 %v975, %v982
    %v987 = vsub.f32 %v978, %v985
    %v988 = vmul.f32 %v986, 1.442695
    %v989 = vpow.pop %v988
    %v990 = vmul.f32 %v987, 1.442695
    %v991 = vpow.pop %v990
    %v992 = vsel %vm150, %v989, 0.0
    %993 = vadd.xlane.f32.xlu0 %v992
    %v994 = vpop.xlane.xlu0 %993
    %v995 = vsel %vm150, %v991, 0.0
    %996 = vadd.xlane.f32.xlu0 %v995
    %v997 = vpop.xlane.xlu0 %996
    %v998 = vrcp.pop %v994
    %v999 = vmul.f32 %v994, %v998
    %v1000 = vsub.f32 1.0, %v999
    %v1001 = vmul.f32 %v998, %v1000
    %v1002 = vadd.f32 %v998, %v1001
    %vm1003 = vweird.f32 %v994
    %vm1004 = vweird.f32 %v998
    %vm1005 = vmor %vm1003, %vm1004
    %v1006 = vsel %vm1005, %v998, %v1002
    %v1007 = vand.u32 2147483647, %v994
    %vm1008 = vcmp.eq.f32.partialorder %v1007, 8.507059e+37
    %v1009 = vand.u32 %v994, 2147483648
    %v1010 = vor.u32 1.1754944e-38, %v1009
    %v1011 = vsel %vm1008, %v1010, %v1006
    %v1012 = vmul.f32 %v989, %v1011
    %v1013 = vrcp.pop %v997
    %v1014 = vmul.f32 %v997, %v1013
    %v1015 = vsub.f32 1.0, %v1014
    %v1016 = vmul.f32 %v1013, %v1015
    %v1017 = vadd.f32 %v1013, %v1016
    %vm1018 = vweird.f32 %v997
    %vm1019 = vweird.f32 %v1013
    %vm1020 = vmor %vm1018, %vm1019
    %v1021 = vsel %vm1020, %v1013, %v1017
    %v1022 = vand.u32 2147483647, %v997
    %vm1023 = vcmp.eq.f32.partialorder %v1022, 8.507059e+37
    %v1024 = vand.u32 %v997, 2147483648
    %v1025 = vor.u32 1.1754944e-38, %v1024
    %v1026 = vsel %vm1023, %v1025, %v1021
    %v1027 = vmul.f32 %v991, %v1026
    %s1028 = scalar_lea.vmem [#allocation14], 64
    %1029 = vst.msk [vmem:[%s1028] sm:$0xff] %vm150, %v1012
    %1030 = vst.msk [vmem:[%s1028 + $0x8] sm:$0xff] %vm150, %v1027
    %v1032 = vsel %vm150, %v1012, 0
    %v1035 = vsel %vm150, %v1027, 0
    %1037 = vmatpush.msra.mxu0 0.0
    %1038 = vmatpush.msra.mxu0 0.0
    %1039 = vmatpush.msra.mxu0 0.0
    %1040 = vmatpush.msra.mxu0 0.0
    %1041 = vmatpush.msra.mxu0 0.0
    %1042 = vmatpush.msra.mxu0 0.0
    %1043 = vmatpush.msra.mxu0 0.0
    %1044 = vmatpush.msra.mxu0 0.0
    %1045 = vmatpush.msra.mxu0 0.0
    %1046 = vmatpush.msra.mxu0 0.0
    %1047 = vmatpush.msra.mxu0 0.0
    %1048 = vmatpush.msra.mxu0 0.0
    %1049 = vmatpush.msra.mxu0 %v348
    %1050 = vmatpush.msra.mxu0 %v345
    %1051 = vmatpush.msra.mxu0 %v342
    %1052 = vmatpush.msra.mxu0 %v339
    %1053 = vmatmul.f32.gmra.mxu0 %v1032
    %v1054 = vpop.f32.mrf.mxu0
    %v1055 = vadd.f32 0.0, %v1054
    %1056 = vmatmul.f32.gmra.mxu0 %v1035
    %v1057 = vpop.f32.mrf.mxu0
    %v1058 = vadd.f32 0.0, %v1057
    %1059 = vdwg.mxu0
    %1060 = vrot.lane.b32.xlu0 %v352, 120
    %v1061 = vpop.permute.xlu0 %1060
    %1062 = vrot.lane.b32.xlu0 %v353, 120
    %v1063 = vpop.permute.xlu0 %1062
    %1064 = vrot.lane.b32.xlu0 %v278, 120
    %v1065 = vpop.permute.xlu0 %1064
    %1066 = vrot.lane.b32.xlu0 %v281, 120
    %v1067 = vpop.permute.xlu0 %1066
    %1068 = vrot.lane.b32.xlu0 %v284, 120
    %v1069 = vpop.permute.xlu0 %1068
    %1070 = vrot.lane.b32.xlu0 %v287, 120
    %v1071 = vpop.permute.xlu0 %1070
    %v1072 = vsel %vm358, %v1061, 0
    %v1074 = vsel %vm358, %v1063, 0
    %v1076 = vsel %vm358, %v1065, 0
    %v1078 = vsel %vm358, %v1067, 0
    %v1080 = vsel %vm358, %v1069, 0
    %v1082 = vsel %vm358, %v1071, 0
    %1084 = vmatpush.xpose.msra.mxu0 0.0
    %1085 = vmatpush.xpose.msra.mxu0 0.0
    %1086 = vmatpush.xpose.msra.mxu0 0.0
    %1087 = vmatpush.xpose.msra.mxu0 0.0
    %1088 = vmatpush.xpose.msra.mxu0 0.0
    %1089 = vmatpush.xpose.msra.mxu0 0.0
    %1090 = vmatpush.xpose.msra.mxu0 0.0
    %1091 = vmatpush.xpose.msra.mxu0 0.0
    %1092 = vmatpush.xpose.msra.mxu0 0.0
    %1093 = vmatpush.xpose.msra.mxu0 0.0
    %1094 = vmatpush.xpose.msra.mxu0 0.0
    %1095 = vmatpush.xpose.msra.mxu0 0.0
    %1096 = vmatpush.xpose.msra.mxu0 %v1082
    %1097 = vmatpush.xpose.msra.mxu0 %v1080
    %1098 = vmatpush.xpose.msra.mxu0 %v1078
    %1099 = vmatpush.xpose.msra.mxu0 %v1076
    %1100 = vmatmul.f32.gmra.mxu0 %v1072
    %v1101 = vpop.f32.mrf.mxu0
    %v1102 = vadd.f32 %v937, %v1101
    %1103 = vmatmul.f32.gmra.mxu0 %v1074
    %v1104 = vpop.f32.mrf.mxu0
    %v1105 = vadd.f32 %v937, %v1104
    %1106 = vdwg.mxu0
    %v1107 = vsel %vm150, %v1102, -inf
    %1108 = vmax.xlane.f32.xlu0 %v1107
    %v1109 = vpop.xlane.xlu0 %1108
    %v1110 = vsel %vm150, %v1105, -inf
    %1111 = vmax.xlane.f32.xlu0 %v1110
    %v1112 = vpop.xlane.xlu0 %1111
    %v1113 = vsub.f32 %v1102, %v1109
    %v1114 = vsub.f32 %v1105, %v1112
    %v1115 = vmul.f32 %v1113, 1.442695
    %v1116 = vpow.pop %v1115
    %v1117 = vmul.f32 %v1114, 1.442695
    %v1118 = vpow.pop %v1117
    %v1119 = vsel %vm150, %v1116, 0.0
    %1120 = vadd.xlane.f32.xlu0 %v1119
    %v1121 = vpop.xlane.xlu0 %1120
    %v1122 = vsel %vm150, %v1118, 0.0
    %1123 = vadd.xlane.f32.xlu0 %v1122
    %v1124 = vpop.xlane.xlu0 %1123
    %v1125 = vrcp.pop %v1121
    %v1126 = vmul.f32 %v1121, %v1125
    %v1127 = vsub.f32 1.0, %v1126
    %v1128 = vmul.f32 %v1125, %v1127
    %v1129 = vadd.f32 %v1125, %v1128
    %vm1130 = vweird.f32 %v1121
    %vm1131 = vweird.f32 %v1125
    %vm1132 = vmor %vm1130, %vm1131
    %v1133 = vsel %vm1132, %v1125, %v1129
    %v1134 = vand.u32 2147483647, %v1121
    %vm1135 = vcmp.eq.f32.partialorder %v1134, 8.507059e+37
    %v1136 = vand.u32 %v1121, 2147483648
    %v1137 = vor.u32 1.1754944e-38, %v1136
    %v1138 = vsel %vm1135, %v1137, %v1133
    %v1139 = vmul.f32 %v1116, %v1138
    %v1140 = vrcp.pop %v1124
    %v1141 = vmul.f32 %v1124, %v1140
    %v1142 = vsub.f32 1.0, %v1141
    %v1143 = vmul.f32 %v1140, %v1142
    %v1144 = vadd.f32 %v1140, %v1143
    %vm1145 = vweird.f32 %v1124
    %vm1146 = vweird.f32 %v1140
    %vm1147 = vmor %vm1145, %vm1146
    %v1148 = vsel %vm1147, %v1140, %v1144
    %v1149 = vand.u32 2147483647, %v1124
    %vm1150 = vcmp.eq.f32.partialorder %v1149, 8.507059e+37
    %v1151 = vand.u32 %v1124, 2147483648
    %v1152 = vor.u32 1.1754944e-38, %v1151
    %v1153 = vsel %vm1150, %v1152, %v1148
    %v1154 = vmul.f32 %v1118, %v1153
    %s1155 = scalar_lea.vmem [#allocation14], 80
    %1156 = vst.msk [vmem:[%s1155] sm:$0xff] %vm150, %v1139
    %1157 = vst.msk [vmem:[%s1155 + $0x8] sm:$0xff] %vm150, %v1154
    %1162 = vrot.lane.b32.xlu0 %v339, 120
    %v1163 = vpop.permute.xlu0 %1162
    %1164 = vrot.lane.b32.xlu0 %v342, 120
    %v1165 = vpop.permute.xlu0 %1164
    %1166 = vrot.lane.b32.xlu0 %v345, 120
    %v1167 = vpop.permute.xlu0 %1166
    %1168 = vrot.lane.b32.xlu0 %v348, 120
    %v1169 = vpop.permute.xlu0 %1168
    %v1175 = vsel %vm150, %v1139, 0
    %v1178 = vsel %vm150, %v1154, 0
    %1180 = vmatpush.msra.mxu0 0.0
    %1181 = vmatpush.msra.mxu0 0.0
    %1182 = vmatpush.msra.mxu0 0.0
    %1183 = vmatpush.msra.mxu0 0.0
    %1184 = vmatpush.msra.mxu0 0.0
    %1185 = vmatpush.msra.mxu0 0.0
    %1186 = vmatpush.msra.mxu0 0.0
    %1187 = vmatpush.msra.mxu0 0.0
    %1188 = vmatpush.msra.mxu0 0.0
    %1189 = vmatpush.msra.mxu0 0.0
    %1190 = vmatpush.msra.mxu0 0.0
    %1191 = vmatpush.msra.mxu0 0.0
    %1192 = vmatpush.msra.mxu0 %v1169
    %1193 = vmatpush.msra.mxu0 %v1167
    %1194 = vmatpush.msra.mxu0 %v1165
    %1195 = vmatpush.msra.mxu0 %v1163
    %1196 = vmatmul.f32.gmra.mxu0 %v1175
    %v1197 = vpop.f32.mrf.mxu0
    %v1198 = vadd.f32 0.0, %v1197
    %1199 = vmatmul.f32.gmra.mxu0 %v1178
    %v1200 = vpop.f32.mrf.mxu0
    %v1201 = vadd.f32 0.0, %v1200
    %1202 = vdwg.mxu0
    %1205 = vrot.lane.b32.xlu0 %v1198, 8
    %v1206 = vpop.permute.xlu0 %1205
    %1207 = vrot.lane.b32.xlu0 %v1201, 8
    %v1208 = vpop.permute.xlu0 %1207
    %v1211 = vsel %vm358, %v1055, %v1206
    %v1212 = vsel %vm358, %v1058, %v1208
    %s1213 = scalar_lea.vmem [#allocation13], 16
    %1214 = vst.msk [vmem:[%s1213] sm:$0xff] %vm632, %v1211
    %1215 = vst.msk [vmem:[%s1213 + $0x8] sm:$0xff] %vm632, %v1212
    %1216 = vrot.lane.b32.xlu0 %v352, 112
    %v1217 = vpop.permute.xlu0 %1216
    %1218 = vrot.lane.b32.xlu0 %v353, 112
    %v1219 = vpop.permute.xlu0 %1218
    %1220 = vrot.lane.b32.xlu0 %v278, 112
    %v1221 = vpop.permute.xlu0 %1220
    %1222 = vrot.lane.b32.xlu0 %v281, 112
    %v1223 = vpop.permute.xlu0 %1222
    %1224 = vrot.lane.b32.xlu0 %v284, 112
    %v1225 = vpop.permute.xlu0 %1224
    %1226 = vrot.lane.b32.xlu0 %v287, 112
    %v1227 = vpop.permute.xlu0 %1226
    %v1228 = vsel %vm358, %v1217, 0
    %v1230 = vsel %vm358, %v1219, 0
    %v1232 = vsel %vm358, %v1221, 0
    %v1234 = vsel %vm358, %v1223, 0
    %v1236 = vsel %vm358, %v1225, 0
    %v1238 = vsel %vm358, %v1227, 0
    %1240 = vmatpush.xpose.msra.mxu0 0.0
    %1241 = vmatpush.xpose.msra.mxu0 0.0
    %1242 = vmatpush.xpose.msra.mxu0 0.0
    %1243 = vmatpush.xpose.msra.mxu0 0.0
    %1244 = vmatpush.xpose.msra.mxu0 0.0
    %1245 = vmatpush.xpose.msra.mxu0 0.0
    %1246 = vmatpush.xpose.msra.mxu0 0.0
    %1247 = vmatpush.xpose.msra.mxu0 0.0
    %1248 = vmatpush.xpose.msra.mxu0 0.0
    %1249 = vmatpush.xpose.msra.mxu0 0.0
    %1250 = vmatpush.xpose.msra.mxu0 0.0
    %1251 = vmatpush.xpose.msra.mxu0 0.0
    %1252 = vmatpush.xpose.msra.mxu0 %v1238
    %1253 = vmatpush.xpose.msra.mxu0 %v1236
    %1254 = vmatpush.xpose.msra.mxu0 %v1234
    %1255 = vmatpush.xpose.msra.mxu0 %v1232
    %1256 = vmatmul.f32.gmra.mxu0 %v1228
    %v1257 = vpop.f32.mrf.mxu0
    %v1258 = vadd.f32 %v937, %v1257
    %1259 = vmatmul.f32.gmra.mxu0 %v1230
    %v1260 = vpop.f32.mrf.mxu0
    %v1261 = vadd.f32 %v937, %v1260
    %1262 = vdwg.mxu0
    %v1263 = vsel %vm150, %v1258, -inf
    %1264 = vmax.xlane.f32.xlu0 %v1263
    %v1265 = vpop.xlane.xlu0 %1264
    %v1266 = vsel %vm150, %v1261, -inf
    %1267 = vmax.xlane.f32.xlu0 %v1266
    %v1268 = vpop.xlane.xlu0 %1267
    %v1269 = vsub.f32 %v1258, %v1265
    %v1270 = vsub.f32 %v1261, %v1268
    %v1271 = vmul.f32 %v1269, 1.442695
    %v1272 = vpow.pop %v1271
    %v1273 = vmul.f32 %v1270, 1.442695
    %v1274 = vpow.pop %v1273
    %v1275 = vsel %vm150, %v1272, 0.0
    %1276 = vadd.xlane.f32.xlu0 %v1275
    %v1277 = vpop.xlane.xlu0 %1276
    %v1278 = vsel %vm150, %v1274, 0.0
    %1279 = vadd.xlane.f32.xlu0 %v1278
    %v1280 = vpop.xlane.xlu0 %1279
    %v1281 = vrcp.pop %v1277
    %v1282 = vmul.f32 %v1277, %v1281
    %v1283 = vsub.f32 1.0, %v1282
    %v1284 = vmul.f32 %v1281, %v1283
    %v1285 = vadd.f32 %v1281, %v1284
    %vm1286 = vweird.f32 %v1277
    %vm1287 = vweird.f32 %v1281
    %vm1288 = vmor %vm1286, %vm1287
    %v1289 = vsel %vm1288, %v1281, %v1285
    %v1290 = vand.u32 2147483647, %v1277
    %vm1291 = vcmp.eq.f32.partialorder %v1290, 8.507059e+37
    %v1292 = vand.u32 %v1277, 2147483648
    %v1293 = vor.u32 1.1754944e-38, %v1292
    %v1294 = vsel %vm1291, %v1293, %v1289
    %v1295 = vmul.f32 %v1272, %v1294
    %v1296 = vrcp.pop %v1280
    %v1297 = vmul.f32 %v1280, %v1296
    %v1298 = vsub.f32 1.0, %v1297
    %v1299 = vmul.f32 %v1296, %v1298
    %v1300 = vadd.f32 %v1296, %v1299
    %vm1301 = vweird.f32 %v1280
    %vm1302 = vweird.f32 %v1296
    %vm1303 = vmor %vm1301, %vm1302
    %v1304 = vsel %vm1303, %v1296, %v1300
    %v1305 = vand.u32 2147483647, %v1280
    %vm1306 = vcmp.eq.f32.partialorder %v1305, 8.507059e+37
    %v1307 = vand.u32 %v1280, 2147483648
    %v1308 = vor.u32 1.1754944e-38, %v1307
    %v1309 = vsel %vm1306, %v1308, %v1304
    %v1310 = vmul.f32 %v1274, %v1309
    %s1311 = scalar_lea.vmem [#allocation14], 96
    %1312 = vst.msk [vmem:[%s1311] sm:$0xff] %vm150, %v1295
    %1313 = vst.msk [vmem:[%s1311 + $0x8] sm:$0xff] %vm150, %v1310
    %1314 = vrot.lane.b32.xlu0 %v339, 112
    %v1315 = vpop.permute.xlu0 %1314
    %1316 = vrot.lane.b32.xlu0 %v342, 112
    %v1317 = vpop.permute.xlu0 %1316
    %1318 = vrot.lane.b32.xlu0 %v345, 112
    %v1319 = vpop.permute.xlu0 %1318
    %1320 = vrot.lane.b32.xlu0 %v348, 112
    %v1321 = vpop.permute.xlu0 %1320
    %v1327 = vsel %vm150, %v1295, 0
    %v1330 = vsel %vm150, %v1310, 0
    %1332 = vmatpush.msra.mxu0 0.0
    %1333 = vmatpush.msra.mxu0 0.0
    %1334 = vmatpush.msra.mxu0 0.0
    %1335 = vmatpush.msra.mxu0 0.0
    %1336 = vmatpush.msra.mxu0 0.0
    %1337 = vmatpush.msra.mxu0 0.0
    %1338 = vmatpush.msra.mxu0 0.0
    %1339 = vmatpush.msra.mxu0 0.0
    %1340 = vmatpush.msra.mxu0 0.0
    %1341 = vmatpush.msra.mxu0 0.0
    %1342 = vmatpush.msra.mxu0 0.0
    %1343 = vmatpush.msra.mxu0 0.0
    %1344 = vmatpush.msra.mxu0 %v1321
    %1345 = vmatpush.msra.mxu0 %v1319
    %1346 = vmatpush.msra.mxu0 %v1317
    %1347 = vmatpush.msra.mxu0 %v1315
    %1348 = vmatmul.f32.gmra.mxu0 %v1327
    %v1349 = vpop.f32.mrf.mxu0
    %v1350 = vadd.f32 0.0, %v1349
    %1351 = vmatmul.f32.gmra.mxu0 %v1330
    %v1352 = vpop.f32.mrf.mxu0
    %v1353 = vadd.f32 0.0, %v1352
    %1354 = vdwg.mxu0
    %1355 = vrot.lane.b32.xlu0 %v352, 104
    %v1356 = vpop.permute.xlu0 %1355
    %1357 = vrot.lane.b32.xlu0 %v353, 104
    %v1358 = vpop.permute.xlu0 %1357
    %1359 = vrot.lane.b32.xlu0 %v278, 104
    %v1360 = vpop.permute.xlu0 %1359
    %1361 = vrot.lane.b32.xlu0 %v281, 104
    %v1362 = vpop.permute.xlu0 %1361
    %1363 = vrot.lane.b32.xlu0 %v284, 104
    %v1364 = vpop.permute.xlu0 %1363
    %1365 = vrot.lane.b32.xlu0 %v287, 104
    %v1366 = vpop.permute.xlu0 %1365
    %v1367 = vsel %vm358, %v1356, 0
    %v1369 = vsel %vm358, %v1358, 0
    %v1371 = vsel %vm358, %v1360, 0
    %v1373 = vsel %vm358, %v1362, 0
    %v1375 = vsel %vm358, %v1364, 0
    %v1377 = vsel %vm358, %v1366, 0
    %1379 = vmatpush.xpose.msra.mxu0 0.0
    %1380 = vmatpush.xpose.msra.mxu0 0.0
    %1381 = vmatpush.xpose.msra.mxu0 0.0
    %1382 = vmatpush.xpose.msra.mxu0 0.0
    %1383 = vmatpush.xpose.msra.mxu0 0.0
    %1384 = vmatpush.xpose.msra.mxu0 0.0
    %1385 = vmatpush.xpose.msra.mxu0 0.0
    %1386 = vmatpush.xpose.msra.mxu0 0.0
    %1387 = vmatpush.xpose.msra.mxu0 0.0
    %1388 = vmatpush.xpose.msra.mxu0 0.0
    %1389 = vmatpush.xpose.msra.mxu0 0.0
    %1390 = vmatpush.xpose.msra.mxu0 0.0
    %1391 = vmatpush.xpose.msra.mxu0 %v1377
    %1392 = vmatpush.xpose.msra.mxu0 %v1375
    %1393 = vmatpush.xpose.msra.mxu0 %v1373
    %1394 = vmatpush.xpose.msra.mxu0 %v1371
    %1395 = vmatmul.f32.gmra.mxu0 %v1367
    %v1396 = vpop.f32.mrf.mxu0
    %v1397 = vadd.f32 %v937, %v1396
    %1398 = vmatmul.f32.gmra.mxu0 %v1369
    %v1399 = vpop.f32.mrf.mxu0
    %v1400 = vadd.f32 %v937, %v1399
    %1401 = vdwg.mxu0
    %v1402 = vsel %vm150, %v1397, -inf
    %1403 = vmax.xlane.f32.xlu0 %v1402
    %v1404 = vpop.xlane.xlu0 %1403
    %v1405 = vsel %vm150, %v1400, -inf
    %1406 = vmax.xlane.f32.xlu0 %v1405
    %v1407 = vpop.xlane.xlu0 %1406
    %v1408 = vsub.f32 %v1397, %v1404
    %v1409 = vsub.f32 %v1400, %v1407
    %v1410 = vmul.f32 %v1408, 1.442695
    %v1411 = vpow.pop %v1410
    %v1412 = vmul.f32 %v1409, 1.442695
    %v1413 = vpow.pop %v1412
    %v1414 = vsel %vm150, %v1411, 0.0
    %1415 = vadd.xlane.f32.xlu0 %v1414
    %v1416 = vpop.xlane.xlu0 %1415
    %v1417 = vsel %vm150, %v1413, 0.0
    %1418 = vadd.xlane.f32.xlu0 %v1417
    %v1419 = vpop.xlane.xlu0 %1418
    %v1420 = vrcp.pop %v1416
    %v1421 = vmul.f32 %v1416, %v1420
    %v1422 = vsub.f32 1.0, %v1421
    %v1423 = vmul.f32 %v1420, %v1422
    %v1424 = vadd.f32 %v1420, %v1423
    %vm1425 = vweird.f32 %v1416
    %vm1426 = vweird.f32 %v1420
    %vm1427 = vmor %vm1425, %vm1426
    %v1428 = vsel %vm1427, %v1420, %v1424
    %v1429 = vand.u32 2147483647, %v1416
    %vm1430 = vcmp.eq.f32.partialorder %v1429, 8.507059e+37
    %v1431 = vand.u32 %v1416, 2147483648
    %v1432 = vor.u32 1.1754944e-38, %v1431
    %v1433 = vsel %vm1430, %v1432, %v1428
    %v1434 = vmul.f32 %v1411, %v1433
    %v1435 = vrcp.pop %v1419
    %v1436 = vmul.f32 %v1419, %v1435
    %v1437 = vsub.f32 1.0, %v1436
    %v1438 = vmul.f32 %v1435, %v1437
    %v1439 = vadd.f32 %v1435, %v1438
    %vm1440 = vweird.f32 %v1419
    %vm1441 = vweird.f32 %v1435
    %vm1442 = vmor %vm1440, %vm1441
    %v1443 = vsel %vm1442, %v1435, %v1439
    %v1444 = vand.u32 2147483647, %v1419
    %vm1445 = vcmp.eq.f32.partialorder %v1444, 8.507059e+37
    %v1446 = vand.u32 %v1419, 2147483648
    %v1447 = vor.u32 1.1754944e-38, %v1446
    %v1448 = vsel %vm1445, %v1447, %v1443
    %v1449 = vmul.f32 %v1413, %v1448
    %s1450 = scalar_lea.vmem [#allocation14], 112
    %1451 = vst.msk [vmem:[%s1450] sm:$0xff] %vm150, %v1434
    %1452 = vst.msk [vmem:[%s1450 + $0x8] sm:$0xff] %vm150, %v1449
    %1453 = vrot.lane.b32.xlu0 %v339, 104
    %v1454 = vpop.permute.xlu0 %1453
    %1455 = vrot.lane.b32.xlu0 %v342, 104
    %v1456 = vpop.permute.xlu0 %1455
    %1457 = vrot.lane.b32.xlu0 %v345, 104
    %v1458 = vpop.permute.xlu0 %1457
    %1459 = vrot.lane.b32.xlu0 %v348, 104
    %v1460 = vpop.permute.xlu0 %1459
    %v1466 = vsel %vm150, %v1434, 0
    %v1469 = vsel %vm150, %v1449, 0
    %1471 = vmatpush.msra.mxu0 0.0
    %1472 = vmatpush.msra.mxu0 0.0
    %1473 = vmatpush.msra.mxu0 0.0
    %1474 = vmatpush.msra.mxu0 0.0
    %1475 = vmatpush.msra.mxu0 0.0
    %1476 = vmatpush.msra.mxu0 0.0
    %1477 = vmatpush.msra.mxu0 0.0
    %1478 = vmatpush.msra.mxu0 0.0
    %1479 = vmatpush.msra.mxu0 0.0
    %1480 = vmatpush.msra.mxu0 0.0
    %1481 = vmatpush.msra.mxu0 0.0
    %1482 = vmatpush.msra.mxu0 0.0
    %1483 = vmatpush.msra.mxu0 %v1460
    %1484 = vmatpush.msra.mxu0 %v1458
    %1485 = vmatpush.msra.mxu0 %v1456
    %1486 = vmatpush.msra.mxu0 %v1454
    %1487 = vmatmul.f32.gmra.mxu0 %v1466
    %v1488 = vpop.f32.mrf.mxu0
    %v1489 = vadd.f32 0.0, %v1488
    %1490 = vmatmul.f32.gmra.mxu0 %v1469
    %v1491 = vpop.f32.mrf.mxu0
    %v1492 = vadd.f32 0.0, %v1491
    %1493 = vdwg.mxu0
    %1496 = vrot.lane.b32.xlu0 %v1489, 8
    %v1497 = vpop.permute.xlu0 %1496
    %1498 = vrot.lane.b32.xlu0 %v1492, 8
    %v1499 = vpop.permute.xlu0 %1498
    %v1502 = vsel %vm358, %v1350, %v1497
    %v1503 = vsel %vm358, %v1353, %v1499
    %1506 = vrot.lane.b32.xlu0 %v1502, 16
    %v1507 = vpop.permute.xlu0 %1506
    %1508 = vrot.lane.b32.xlu0 %v1503, 16
    %v1509 = vpop.permute.xlu0 %1508
    %1512 = vst.msk [vmem:[%s1213] sm:$0xff] %vm931, %v1507
    %1513 = vst.msk [vmem:[%s1213 + $0x8] sm:$0xff] %vm931, %v1509
    // Predicated region
    $region62: #{tpu_custom_call.1} parent=1 // pred_check
      _
    $region63: #{tpu_custom_call.1} parent=1 // pred_check_branch
      %1515 = sbr.rel (0) target = $region65
    $region64: #{tpu_custom_call.1} parent=1 // pred_region
      %1517 = vsyncadd [#allocation4], 0
      %s1518 = sshll.u32 [#allocation13], 4
      %s1519 = int_to_ptr.vmem [resolvable:$true] %s1518
      %s1520 = sshll.u32 %s9, 4
      %s1521 = int_to_ptr.hbm [resolvable:$true] %s1520
      %1526 = dma.vmem_to_hbm [thread:$0]  %s1519, 512, %s1521, [#allocation4], 128, 128, 8
    $region65: #{tpu_custom_call.1} parent=1 // pred_fallthru
      _
    // Predicated region
    $region66: #{tpu_custom_call.1} parent=1 // pred_check
      _
    $region67: #{tpu_custom_call.1} parent=1 // pred_check_branch
      %1528 = sbr.rel (0) target = $region69
    $region68: #{tpu_custom_call.1} parent=1 // pred_region
      %1530 = vsyncadd [#allocation15], 0
      %s1531 = sshll.u32 [#allocation14], 4
      %s1532 = int_to_ptr.vmem [resolvable:$true] %s1531
      %s1533 = sshll.u32 %s10, 4
      %s1534 = int_to_ptr.hbm [resolvable:$true] %s1533
      %1539 = dma.vmem_to_hbm [thread:$0]  %s1532, 2048, %s1534, [#allocation15], 128, 128, 8
    $region69: #{tpu_custom_call.1} parent=1 // pred_fallthru
      _
    // Predicated region
    $region70: #{tpu_custom_call.1} parent=1 // pred_check
      _
    $region71: #{tpu_custom_call.1} parent=1 // pred_check_branch
      %1541 = sbr.rel (0) target = $region73
    $region72: #{tpu_custom_call.1} parent=1 // pred_region
      %1543 = dma.done [#allocation4], 512
    $region73: #{tpu_custom_call.1} parent=1 // pred_fallthru
      _
    // Predicated region
    $region74: #{tpu_custom_call.1} parent=1 // pred_check
      _
    $region75: #{tpu_custom_call.1} parent=1 // pred_check_branch
      %1545 = sbr.rel (0) target = $region77
    $region76: #{tpu_custom_call.1} parent=1 // pred_region
      %1547 = dma.done [#allocation15], 2048
    $region77: #{tpu_custom_call.1} parent=1 // pred_fallthru
      _
    %1548 = vsyncpa [#allocation3], 1
    %1549 = vsyncpa [#allocation6], 1
    %1550 = vsyncpa [#allocation9], 1
    %1551 = vsyncpa [#allocation12], 1
    %1552 = vsyncpa [#allocation4], 1
    %1553 = vsyncpa [#allocation15], 1

</llo_original>
